<compile_context>
chip_gen: v7x
topology: tpu7x:2x2x1
jax: 0.10.0
libtpu: 0.0.40
codegen_flags: <defaults>
</compile_context>

<pallas_src>
import jax
import jax.numpy as jnp
from jax.experimental import pallas as pl
from jax.experimental.pallas import tpu as pltpu

HIDDEN = 16
OUT = 5
K0 = 24            # layer-0 matmul K: [h0(16) | x(1) | 1(1) | zero pad(6)]
K1 = 40            # layer-1 matmul K: [h0(16) | h1(16) | 1(1) | zero pad(7)]
NG = 4 * HIDDEN    # per-step matmul N: [r_pre | z_pre | gi_n | gh_n]


# ----------------------------------------------------------------------------- kernel
def _gru_gate_update(g, h_prev):
    """g columns: [r_pre | z_pre | gi_n | gh_n], H lanes each; biases already folded via matmul.

    PyTorch GRU: r=sig(gi_r+gh_r); z=sig(gi_z+gh_z); n=tanh(gi_n + r*gh_n); h'=(1-z)*n + z*h.
    (b_hn lives inside gh_n, so it stays inside the r * (...) term.)
    """
    H = HIDDEN
    r = jax.nn.sigmoid(g[:, 0:H])
    z = jax.nn.sigmoid(g[:, H:2 * H])
    n = jnp.tanh(g[:, 2 * H:3 * H] + r * g[:, 3 * H:4 * H])
    return (1.0 - z) * n + z * h_prev


def myrnn_kernel(x_ref, w0_ref, w1_ref, wfc_ref, bfc_ref, out_ref):
    Bb, T = x_ref.shape

    # Whole-ref loads only (ref slices are not views on TPU; avoid in-kernel slab slicing).
    x_bt = x_ref[...].astype(jnp.float32)     # (Bb, T)
    w0 = w0_ref[...]                          # (K0, 4H)
    w1 = w1_ref[...]                          # (K1, 4H)
    wfc = wfc_ref[...]                        # (H, OUT)
    bfc = bfc_ref[...]                        # (1, OUT)

    # Loop-invariant constant lanes (traced once, outside the recurrence): a one followed by
    # zero padding so every matmul LHS has a K that is a multiple of 8.
    ones1 = jnp.ones((Bb, 1), jnp.float32)
    tail0 = jnp.concatenate([ones1, jnp.zeros((Bb, K0 - HIDDEN - 2), jnp.float32)], axis=1)
    tail1 = jnp.concatenate([ones1, jnp.zeros((Bb, K1 - 2 * HIDDEN - 1), jnp.float32)], axis=1)

    h0 = jnp.zeros((Bb, HIDDEN), jnp.float32)
    h1 = jnp.zeros((Bb, HIDDEN), jnp.float32)

    # T is small and static -> unrolled.
    # TODO(synk): for large T switch to lax.fori_loop(..., unroll=2) carrying (h0, h1).
    for t in range(T):
        # layer 0: one dense matmul per step; x and both biases ride the extra input lanes.
        in0 = jnp.concatenate([h0, x_bt[:, t:t + 1], tail0], axis=1)   # (Bb, K0)
        g0 = jnp.dot(in0, w0, preferred_element_type=jnp.float32)      # (Bb, 4H)
        h0 = _gru_gate_update(g0, h0)

        # layer 1: one fused matmul producing [r_pre | z_pre | gi_n | gh_n].
        in1 = jnp.concatenate([h0, h1, tail1], axis=1)                 # (Bb, K1)
        g1 = jnp.dot(in1, w1, preferred_element_type=jnp.float32)      # (Bb, 4H)
        h1 = _gru_gate_update(g1, h1)

    # rnn_out[:, -1, :] == final hidden of the top layer -> tanh -> FC.
    feat = jnp.tanh(h1)                                                # (Bb, H)
    out = jnp.dot(feat, wfc, preferred_element_type=jnp.float32) + bfc
    out_ref[...] = out.astype(out_ref.dtype)


# ----------------------------------------------------------------------------- wrapper
def _pick_block_b(B):
    """v7x has 2 TensorCores: prefer >= 2 parallel grid steps when B >= 16 so both get work.
    v5e/v6e have a single TC (serial grid), so keep blocks as fat as divisibility allows."""
    if B < 16 or B % 8 != 0:
        return B
    best = 8
    for cand in range(8, min(B // 2, 256) + 1, 8):
        if B % cand == 0:
            best = cand
    return best


def myrnn_forward(x, packed):
    """x: (B, T, 1) batch_first, like the PyTorch module. packed: (w0, w1, wfc, bfc)."""
    w0, w1, wfc, bfc = packed
    B, T, _ = x.shape
    x2 = x.reshape(B, T).astype(jnp.float32)   # drop the size-1 input dim

    block_b = _pick_block_b(B)
    grid = (B // block_b,)

    return pl.pallas_call(
        myrnn_kernel,
        out_shape=jax.ShapeDtypeStruct((B, OUT), jnp.float32),
        grid=grid,
        in_specs=[
            pl.BlockSpec((block_b, T), lambda i: (i, 0)),   # x block
            pl.BlockSpec(w0.shape, lambda i: (0, 0)),       # weights stay resident across steps
            pl.BlockSpec(w1.shape, lambda i: (0, 0)),
            pl.BlockSpec(wfc.shape, lambda i: (0, 0)),
            pl.BlockSpec(bfc.shape, lambda i: (0, 0)),
        ],
        out_specs=pl.BlockSpec((block_b, OUT), lambda i: (i, 0)),
        compiler_params=pltpu.CompilerParams(dimension_semantics=("parallel",)),
    )(x2, w0, w1, wfc, bfc)


# ----------------------------------------------------------------------------- params
def init_params(key):
    """Deterministic init mimicking PyTorch's uniform(-1/sqrt(H), 1/sqrt(H)).

    Weights are stored pre-transposed: (in_dim, 3H) with gate column order [r|z|n]; biases (1, 3H).
    """
    k = 1.0 / jnp.sqrt(jnp.float32(HIDDEN))
    keys = jax.random.split(key, 10)

    def u(kk, shape):
        return jax.random.uniform(kk, shape, jnp.float32, -k, k)

    wih0 = u(keys[0], (1, 3 * HIDDEN))
    whh0 = u(keys[1], (HIDDEN, 3 * HIDDEN))
    bih0 = u(keys[2], (1, 3 * HIDDEN))
    bhh0 = u(keys[3], (1, 3 * HIDDEN))
    wih1 = u(keys[4], (HIDDEN, 3 * HIDDEN))
    whh1 = u(keys[5], (HIDDEN, 3 * HIDDEN))
    bih1 = u(keys[6], (1, 3 * HIDDEN))
    bhh1 = u(keys[7], (1, 3 * HIDDEN))
    wfc = u(keys[8], (HIDDEN, OUT))
    bfc = u(keys[9], (1, OUT))
    return (wih0, whh0, bih0, bhh0, wih1, whh1, bih1, bhh1, wfc, bfc)


def pack_params(params):
    """Pack the raw GRU/FC params into two dense per-step matmul weights (once, host-side).

    Per-step matmul output columns (both layers): [r_pre | z_pre | gi_n | gh_n], H lanes each.
    r_pre/z_pre already contain gi+gh and BOTH biases (picked up by the constant-one input lane),
    so the only per-step elementwise work left is the gate nonlinearities and the h update.
    """
    (wih0, whh0, bih0, bhh0, wih1, whh1, bih1, bhh1, wfc, bfc) = params
    H = HIDDEN

    def col(w, g):                       # gate column block g of a (K, 3H) weight / (1, 3H) bias
        return w[:, g * H:(g + 1) * H]

    # layer 0: LHS rows = [h0 (0:16) | x (16) | 1 (17) | zero pad (18:24)]
    w0 = jnp.zeros((K0, NG), jnp.float32)
    # r_pre
    w0 = w0.at[0:H, 0:H].set(col(whh0, 0))
    w0 = w0.at[H, 0:H].set(col(wih0, 0)[0])
    w0 = w0.at[H + 1, 0:H].set(col(bih0, 0)[0] + col(bhh0, 0)[0])
    # z_pre
    w0 = w0.at[0:H, H:2 * H].set(col(whh0, 1))
    w0 = w0.at[H, H:2 * H].set(col(wih0, 1)[0])
    w0 = w0.at[H + 1, H:2 * H].set(col(bih0, 1)[0] + col(bhh0, 1)[0])
    # gi_n (input + b_in only)
    w0 = w0.at[H, 2 * H:3 * H].set(col(wih0, 2)[0])
    w0 = w0.at[H + 1, 2 * H:3 * H].set(col(bih0, 2)[0])
    # gh_n (hidden + b_hn only; stays inside the r*() term)
    w0 = w0.at[0:H, 3 * H:4 * H].set(col(whh0, 2))
    w0 = w0.at[H + 1, 3 * H:4 * H].set(col(bhh0, 2)[0])

    # layer 1: LHS rows = [h0 (0:16) | h1 (16:32) | 1 (32) | zero pad (33:40)]
    w1 = jnp.zeros((K1, NG), jnp.float32)
    # r_pre
    w1 = w1.at[0:H, 0:H].set(col(wih1, 0))
    w1 = w1.at[H:2 * H, 0:H].set(col(whh1, 0))
    w1 = w1.at[2 * H, 0:H].set(col(bih1, 0)[0] + col(bhh1, 0)[0])
    # z_pre
    w1 = w1.at[0:H, H:2 * H].set(col(wih1, 1))
    w1 = w1.at[H:2 * H, H:2 * H].set(col(whh1, 1))
    w1 = w1.at[2 * H, H:2 * H].set(col(bih1, 1)[0] + col(bhh1, 1)[0])
    # gi_n
    w1 = w1.at[0:H, 2 * H:3 * H].set(col(wih1, 2))
    w1 = w1.at[2 * H, 2 * H:3 * H].set(col(bih1, 2)[0])
    # gh_n
    w1 = w1.at[H:2 * H, 3 * H:4 * H].set(col(whh1, 2))
    w1 = w1.at[2 * H, 3 * H:4 * H].set(col(bhh1, 2)[0])

    return w0, w1, wfc, bfc


# ----------------------------------------------------------------------------- reference
def myrnn_reference(x, params):
    """Pure-JAX reference on the raw (unpadded) params."""
    (wih0, whh0, bih0, bhh0, wih1, whh1, bih1, bhh1, wfc, bfc) = params
    H = HIDDEN
    B, T, _ = x.shape

    def cell(inp, h_prev, wih, whh, bih, bhh):
        gi = inp @ wih + bih
        gh = h_prev @ whh + bhh
        r = jax.nn.sigmoid(gi[:, :H] + gh[:, :H])
        z = jax.nn.sigmoid(gi[:, H:2 * H] + gh[:, H:2 * H])
        n = jnp.tanh(gi[:, 2 * H:] + r * gh[:, 2 * H:])
        return (1.0 - z) * n + z * h_prev

    h0 = jnp.zeros((B, H), jnp.float32)
    h1 = jnp.zeros((B, H), jnp.float32)
    for t in range(T):
        h0 = cell(x[:, t, :], h0, wih0, whh0, bih0, bhh0)
        h1 = cell(h0, h1, wih1, whh1, bih1, bhh1)
    return jnp.tanh(h1) @ wfc + bfc


if __name__ == "__main__":
    key = jax.random.PRNGKey(0)
    k_x, k_p = jax.random.split(key)

    B, T = 8, 8
    x = jax.random.normal(k_x, (B, T, 1), jnp.float32)   # (batch, seq, input_size=1)
    params = init_params(k_p)
    packed = pack_params(params)

    out = myrnn_forward(x, packed)
    out = jax.block_until_ready(out)

    ref = myrnn_reference(x, params)
    assert out.shape == (B, OUT)
    # Both kernel and reference matmuls run at TPU DEFAULT (bf16-pass) precision; the tolerance
    # covers that. For exact f32, set precision=jax.lax.Precision.HIGHEST in both.
    assert jnp.allclose(out, ref, atol=5e-3, rtol=5e-3), "mismatch vs JAX reference"

    print("KERNEL_OK")
</pallas_src>

<mosaic_0001>
module attributes {stable_mosaic.version = 11 : i64} {
  func.func @myrnn_kernel(%arg0: i32, %arg1: memref<8x8xf32, #tpu.memory_space<vmem>>, %arg2: memref<24x64xf32, #tpu.memory_space<vmem>>, %arg3: memref<40x64xf32, #tpu.memory_space<vmem>>, %arg4: memref<16x5xf32, #tpu.memory_space<vmem>>, %arg5: memref<1x5xf32, #tpu.memory_space<vmem>>, %arg6: memref<8x5xf32, #tpu.memory_space<vmem>>) attributes {dimension_semantics = [#tpu.dimension_semantics<parallel>], iteration_bounds = array<i64: 1>, scalar_prefetch = 0 : i64, scratch_operands = 0 : i64, tpu.core_type = #tpu.core_type<tc>, window_params = [{transform_indices = @transform_0, window_bounds = array<i64: 8, 8>}, {pipeline_mode = #tpu.pipeline_mode<synchronous>, transform_indices = @transform_1, window_bounds = array<i64: 24, 64>}, {pipeline_mode = #tpu.pipeline_mode<synchronous>, transform_indices = @transform_2, window_bounds = array<i64: 40, 64>}, {pipeline_mode = #tpu.pipeline_mode<synchronous>, transform_indices = @transform_3, window_bounds = array<i64: 16, 5>}, {pipeline_mode = #tpu.pipeline_mode<synchronous>, transform_indices = @transform_4, window_bounds = array<i64: 1, 5>}, {transform_indices = @transform_5, window_bounds = array<i64: 8, 5>}]} {
    %c0 = arith.constant 0 : index
    %c0_0 = arith.constant 0 : index
    %0 = vector.load %arg1[%c0, %c0_0] : memref<8x8xf32, #tpu.memory_space<vmem>>, vector<8x8xf32>
    %c0_1 = arith.constant 0 : index
    %c0_2 = arith.constant 0 : index
    %1 = vector.load %arg2[%c0_1, %c0_2] : memref<24x64xf32, #tpu.memory_space<vmem>>, vector<24x64xf32>
    %c0_3 = arith.constant 0 : index
    %c0_4 = arith.constant 0 : index
    %2 = vector.load %arg3[%c0_3, %c0_4] : memref<40x64xf32, #tpu.memory_space<vmem>>, vector<40x64xf32>
    %c0_5 = arith.constant 0 : index
    %c0_6 = arith.constant 0 : index
    %3 = vector.load %arg4[%c0_5, %c0_6] : memref<16x5xf32, #tpu.memory_space<vmem>>, vector<16x5xf32>
    %c0_7 = arith.constant 0 : index
    %c0_8 = arith.constant 0 : index
    %4 = vector.load %arg5[%c0_7, %c0_8] : memref<1x5xf32, #tpu.memory_space<vmem>>, vector<1x5xf32>
    %cst = arith.constant 1.000000e+00 : f32
    %5 = vector.broadcast %cst : f32 to vector<8x1xf32>
    %cst_9 = arith.constant 0.000000e+00 : f32
    %6 = vector.broadcast %cst_9 : f32 to vector<8x6xf32>
    %7 = tpu.concatenate %5, %6 in 1 : vector<8x1xf32>, vector<8x6xf32> -> vector<8x7xf32>
    %cst_10 = arith.constant 0.000000e+00 : f32
    %8 = vector.broadcast %cst_10 : f32 to vector<8x7xf32>
    %9 = tpu.concatenate %5, %8 in 1 : vector<8x1xf32>, vector<8x7xf32> -> vector<8x8xf32>
    %cst_11 = arith.constant 0.000000e+00 : f32
    %10 = vector.broadcast %cst_11 : f32 to vector<8x16xf32>
    %cst_12 = arith.constant 0.000000e+00 : f32
    %11 = vector.broadcast %cst_12 : f32 to vector<8x16xf32>
    %12 = vector.extract_strided_slice %0 {offsets = [0, 0], sizes = [8, 1], strides = [1, 1]} : vector<8x8xf32> to vector<8x1xf32>
    %13 = tpu.concatenate %10, %12, %7 in 1 : vector<8x16xf32>, vector<8x1xf32>, vector<8x7xf32> -> vector<8x24xf32>
    %cst_13 = arith.constant dense<0.000000e+00> : vector<8x64xf32>
    %14 = tpu.matmul %13, %1, %cst_13 {dimension_numbers = #tpu.dot_dimension_numbers<[1], [0], [0], [1], [0, 0, 1, 1], [], []>} : vector<8x24xf32>, vector<24x64xf32>, vector<8x64xf32> -> vector<8x64xf32>
    %15 = vector.extract_strided_slice %14 {offsets = [0, 0], sizes = [8, 16], strides = [1, 1]} : vector<8x64xf32> to vector<8x16xf32>
    %16 = arith.negf %15 : vector<8x16xf32>
    %17 = math.exp %16 : vector<8x16xf32>
    %cst_14 = arith.constant 1.000000e+00 : f32
    %18 = vector.broadcast %cst_14 : f32 to vector<8x16xf32>
    %19 = arith.addf %18, %17 : vector<8x16xf32>
    %20 = arith.divf %18, %19 : vector<8x16xf32>
    %21 = vector.extract_strided_slice %14 {offsets = [0, 16], sizes = [8, 16], strides = [1, 1]} : vector<8x64xf32> to vector<8x16xf32>
    %22 = arith.negf %21 : vector<8x16xf32>
    %23 = math.exp %22 : vector<8x16xf32>
    %cst_15 = arith.constant 1.000000e+00 : f32
    %24 = vector.broadcast %cst_15 : f32 to vector<8x16xf32>
    %25 = arith.addf %24, %23 : vector<8x16xf32>
    %26 = arith.divf %24, %25 : vector<8x16xf32>
    %27 = vector.extract_strided_slice %14 {offsets = [0, 32], sizes = [8, 16], strides = [1, 1]} : vector<8x64xf32> to vector<8x16xf32>
    %28 = vector.extract_strided_slice %14 {offsets = [0, 48], sizes = [8, 16], strides = [1, 1]} : vector<8x64xf32> to vector<8x16xf32>
    %29 = arith.mulf %20, %28 : vector<8x16xf32>
    %30 = arith.addf %27, %29 : vector<8x16xf32>
    %31 = math.tanh %30 : vector<8x16xf32>
    %cst_16 = arith.constant 1.000000e+00 : f32
    %32 = vector.broadcast %cst_16 : f32 to vector<8x16xf32>
    %33 = arith.subf %32, %26 : vector<8x16xf32>
    %34 = arith.mulf %33, %31 : vector<8x16xf32>
    %35 = arith.mulf %26, %10 : vector<8x16xf32>
    %36 = arith.addf %34, %35 : vector<8x16xf32>
    %37 = tpu.concatenate %36, %11, %9 in 1 : vector<8x16xf32>, vector<8x16xf32>, vector<8x8xf32> -> vector<8x40xf32>
    %cst_17 = arith.constant dense<0.000000e+00> : vector<8x64xf32>
    %38 = tpu.matmul %37, %2, %cst_17 {dimension_numbers = #tpu.dot_dimension_numbers<[1], [0], [0], [1], [0, 0, 1, 1], [], []>} : vector<8x40xf32>, vector<40x64xf32>, vector<8x64xf32> -> vector<8x64xf32>
    %39 = vector.extract_strided_slice %38 {offsets = [0, 0], sizes = [8, 16], strides = [1, 1]} : vector<8x64xf32> to vector<8x16xf32>
    %40 = arith.negf %39 : vector<8x16xf32>
    %41 = math.exp %40 : vector<8x16xf32>
    %cst_18 = arith.constant 1.000000e+00 : f32
    %42 = vector.broadcast %cst_18 : f32 to vector<8x16xf32>
    %43 = arith.addf %42, %41 : vector<8x16xf32>
    %44 = arith.divf %42, %43 : vector<8x16xf32>
    %45 = vector.extract_strided_slice %38 {offsets = [0, 16], sizes = [8, 16], strides = [1, 1]} : vector<8x64xf32> to vector<8x16xf32>
    %46 = arith.negf %45 : vector<8x16xf32>
    %47 = math.exp %46 : vector<8x16xf32>
    %cst_19 = arith.constant 1.000000e+00 : f32
    %48 = vector.broadcast %cst_19 : f32 to vector<8x16xf32>
    %49 = arith.addf %48, %47 : vector<8x16xf32>
    %50 = arith.divf %48, %49 : vector<8x16xf32>
    %51 = vector.extract_strided_slice %38 {offsets = [0, 32], sizes = [8, 16], strides = [1, 1]} : vector<8x64xf32> to vector<8x16xf32>
    %52 = vector.extract_strided_slice %38 {offsets = [0, 48], sizes = [8, 16], strides = [1, 1]} : vector<8x64xf32> to vector<8x16xf32>
    %53 = arith.mulf %44, %52 : vector<8x16xf32>
    %54 = arith.addf %51, %53 : vector<8x16xf32>
    %55 = math.tanh %54 : vector<8x16xf32>
    %cst_20 = arith.constant 1.000000e+00 : f32
    %56 = vector.broadcast %cst_20 : f32 to vector<8x16xf32>
    %57 = arith.subf %56, %50 : vector<8x16xf32>
    %58 = arith.mulf %57, %55 : vector<8x16xf32>
    %59 = arith.mulf %50, %11 : vector<8x16xf32>
    %60 = arith.addf %58, %59 : vector<8x16xf32>
    %61 = vector.extract_strided_slice %0 {offsets = [0, 1], sizes = [8, 1], strides = [1, 1]} : vector<8x8xf32> to vector<8x1xf32>
    %62 = tpu.concatenate %36, %61, %7 in 1 : vector<8x16xf32>, vector<8x1xf32>, vector<8x7xf32> -> vector<8x24xf32>
    %cst_21 = arith.constant dense<0.000000e+00> : vector<8x64xf32>
    %63 = tpu.matmul %62, %1, %cst_21 {dimension_numbers = #tpu.dot_dimension_numbers<[1], [0], [0], [1], [0, 0, 1, 1], [], []>} : vector<8x24xf32>, vector<24x64xf32>, vector<8x64xf32> -> vector<8x64xf32>
    %64 = vector.extract_strided_slice %63 {offsets = [0, 0], sizes = [8, 16], strides = [1, 1]} : vector<8x64xf32> to vector<8x16xf32>
    %65 = arith.negf %64 : vector<8x16xf32>
    %66 = math.exp %65 : vector<8x16xf32>
    %cst_22 = arith.constant 1.000000e+00 : f32
    %67 = vector.broadcast %cst_22 : f32 to vector<8x16xf32>
    %68 = arith.addf %67, %66 : vector<8x16xf32>
    %69 = arith.divf %67, %68 : vector<8x16xf32>
    %70 = vector.extract_strided_slice %63 {offsets = [0, 16], sizes = [8, 16], strides = [1, 1]} : vector<8x64xf32> to vector<8x16xf32>
    %71 = arith.negf %70 : vector<8x16xf32>
    %72 = math.exp %71 : vector<8x16xf32>
    %cst_23 = arith.constant 1.000000e+00 : f32
    %73 = vector.broadcast %cst_23 : f32 to vector<8x16xf32>
    %74 = arith.addf %73, %72 : vector<8x16xf32>
    %75 = arith.divf %73, %74 : vector<8x16xf32>
    %76 = vector.extract_strided_slice %63 {offsets = [0, 32], sizes = [8, 16], strides = [1, 1]} : vector<8x64xf32> to vector<8x16xf32>
    %77 = vector.extract_strided_slice %63 {offsets = [0, 48], sizes = [8, 16], strides = [1, 1]} : vector<8x64xf32> to vector<8x16xf32>
    %78 = arith.mulf %69, %77 : vector<8x16xf32>
    %79 = arith.addf %76, %78 : vector<8x16xf32>
    %80 = math.tanh %79 : vector<8x16xf32>
    %cst_24 = arith.constant 1.000000e+00 : f32
    %81 = vector.broadcast %cst_24 : f32 to vector<8x16xf32>
    %82 = arith.subf %81, %75 : vector<8x16xf32>
    %83 = arith.mulf %82, %80 : vector<8x16xf32>
    %84 = arith.mulf %75, %36 : vector<8x16xf32>
    %85 = arith.addf %83, %84 : vector<8x16xf32>
    %86 = tpu.concatenate %85, %60, %9 in 1 : vector<8x16xf32>, vector<8x16xf32>, vector<8x8xf32> -> vector<8x40xf32>
    %cst_25 = arith.constant dense<0.000000e+00> : vector<8x64xf32>
    %87 = tpu.matmul %86, %2, %cst_25 {dimension_numbers = #tpu.dot_dimension_numbers<[1], [0], [0], [1], [0, 0, 1, 1], [], []>} : vector<8x40xf32>, vector<40x64xf32>, vector<8x64xf32> -> vector<8x64xf32>
    %88 = vector.extract_strided_slice %87 {offsets = [0, 0], sizes = [8, 16], strides = [1, 1]} : vector<8x64xf32> to vector<8x16xf32>
    %89 = arith.negf %88 : vector<8x16xf32>
    %90 = math.exp %89 : vector<8x16xf32>
    %cst_26 = arith.constant 1.000000e+00 : f32
    %91 = vector.broadcast %cst_26 : f32 to vector<8x16xf32>
    %92 = arith.addf %91, %90 : vector<8x16xf32>
    %93 = arith.divf %91, %92 : vector<8x16xf32>
    %94 = vector.extract_strided_slice %87 {offsets = [0, 16], sizes = [8, 16], strides = [1, 1]} : vector<8x64xf32> to vector<8x16xf32>
    %95 = arith.negf %94 : vector<8x16xf32>
    %96 = math.exp %95 : vector<8x16xf32>
    %cst_27 = arith.constant 1.000000e+00 : f32
    %97 = vector.broadcast %cst_27 : f32 to vector<8x16xf32>
    %98 = arith.addf %97, %96 : vector<8x16xf32>
    %99 = arith.divf %97, %98 : vector<8x16xf32>
    %100 = vector.extract_strided_slice %87 {offsets = [0, 32], sizes = [8, 16], strides = [1, 1]} : vector<8x64xf32> to vector<8x16xf32>
    %101 = vector.extract_strided_slice %87 {offsets = [0, 48], sizes = [8, 16], strides = [1, 1]} : vector<8x64xf32> to vector<8x16xf32>
    %102 = arith.mulf %93, %101 : vector<8x16xf32>
    %103 = arith.addf %100, %102 : vector<8x16xf32>
    %104 = math.tanh %103 : vector<8x16xf32>
    %cst_28 = arith.constant 1.000000e+00 : f32
    %105 = vector.broadcast %cst_28 : f32 to vector<8x16xf32>
    %106 = arith.subf %105, %99 : vector<8x16xf32>
    %107 = arith.mulf %106, %104 : vector<8x16xf32>
    %108 = arith.mulf %99, %60 : vector<8x16xf32>
    %109 = arith.addf %107, %108 : vector<8x16xf32>
    %110 = vector.extract_strided_slice %0 {offsets = [0, 2], sizes = [8, 1], strides = [1, 1]} : vector<8x8xf32> to vector<8x1xf32>
    %111 = tpu.concatenate %85, %110, %7 in 1 : vector<8x16xf32>, vector<8x1xf32>, vector<8x7xf32> -> vector<8x24xf32>
    %cst_29 = arith.constant dense<0.000000e+00> : vector<8x64xf32>
    %112 = tpu.matmul %111, %1, %cst_29 {dimension_numbers = #tpu.dot_dimension_numbers<[1], [0], [0], [1], [0, 0, 1, 1], [], []>} : vector<8x24xf32>, vector<24x64xf32>, vector<8x64xf32> -> vector<8x64xf32>
    %113 = vector.extract_strided_slice %112 {offsets = [0, 0], sizes = [8, 16], strides = [1, 1]} : vector<8x64xf32> to vector<8x16xf32>
    %114 = arith.negf %113 : vector<8x16xf32>
    %115 = math.exp %114 : vector<8x16xf32>
    %cst_30 = arith.constant 1.000000e+00 : f32
    %116 = vector.broadcast %cst_30 : f32 to vector<8x16xf32>
    %117 = arith.addf %116, %115 : vector<8x16xf32>
    %118 = arith.divf %116, %117 : vector<8x16xf32>
    %119 = vector.extract_strided_slice %112 {offsets = [0, 16], sizes = [8, 16], strides = [1, 1]} : vector<8x64xf32> to vector<8x16xf32>
    %120 = arith.negf %119 : vector<8x16xf32>
    %121 = math.exp %120 : vector<8x16xf32>
    %cst_31 = arith.constant 1.000000e+00 : f32
    %122 = vector.broadcast %cst_31 : f32 to vector<8x16xf32>
    %123 = arith.addf %122, %121 : vector<8x16xf32>
    %124 = arith.divf %122, %123 : vector<8x16xf32>
    %125 = vector.extract_strided_slice %112 {offsets = [0, 32], sizes = [8, 16], strides = [1, 1]} : vector<8x64xf32> to vector<8x16xf32>
    %126 = vector.extract_strided_slice %112 {offsets = [0, 48], sizes = [8, 16], strides = [1, 1]} : vector<8x64xf32> to vector<8x16xf32>
    %127 = arith.mulf %118, %126 : vector<8x16xf32>
    %128 = arith.addf %125, %127 : vector<8x16xf32>
    %129 = math.tanh %128 : vector<8x16xf32>
    %cst_32 = arith.constant 1.000000e+00 : f32
    %130 = vector.broadcast %cst_32 : f32 to vector<8x16xf32>
    %131 = arith.subf %130, %124 : vector<8x16xf32>
    %132 = arith.mulf %131, %129 : vector<8x16xf32>
    %133 = arith.mulf %124, %85 : vector<8x16xf32>
    %134 = arith.addf %132, %133 : vector<8x16xf32>
    %135 = tpu.concatenate %134, %109, %9 in 1 : vector<8x16xf32>, vector<8x16xf32>, vector<8x8xf32> -> vector<8x40xf32>
    %cst_33 = arith.constant dense<0.000000e+00> : vector<8x64xf32>
    %136 = tpu.matmul %135, %2, %cst_33 {dimension_numbers = #tpu.dot_dimension_numbers<[1], [0], [0], [1], [0, 0, 1, 1], [], []>} : vector<8x40xf32>, vector<40x64xf32>, vector<8x64xf32> -> vector<8x64xf32>
    %137 = vector.extract_strided_slice %136 {offsets = [0, 0], sizes = [8, 16], strides = [1, 1]} : vector<8x64xf32> to vector<8x16xf32>
    %138 = arith.negf %137 : vector<8x16xf32>
    %139 = math.exp %138 : vector<8x16xf32>
    %cst_34 = arith.constant 1.000000e+00 : f32
    %140 = vector.broadcast %cst_34 : f32 to vector<8x16xf32>
    %141 = arith.addf %140, %139 : vector<8x16xf32>
    %142 = arith.divf %140, %141 : vector<8x16xf32>
    %143 = vector.extract_strided_slice %136 {offsets = [0, 16], sizes = [8, 16], strides = [1, 1]} : vector<8x64xf32> to vector<8x16xf32>
    %144 = arith.negf %143 : vector<8x16xf32>
    %145 = math.exp %144 : vector<8x16xf32>
    %cst_35 = arith.constant 1.000000e+00 : f32
    %146 = vector.broadcast %cst_35 : f32 to vector<8x16xf32>
    %147 = arith.addf %146, %145 : vector<8x16xf32>
    %148 = arith.divf %146, %147 : vector<8x16xf32>
    %149 = vector.extract_strided_slice %136 {offsets = [0, 32], sizes = [8, 16], strides = [1, 1]} : vector<8x64xf32> to vector<8x16xf32>
    %150 = vector.extract_strided_slice %136 {offsets = [0, 48], sizes = [8, 16], strides = [1, 1]} : vector<8x64xf32> to vector<8x16xf32>
    %151 = arith.mulf %142, %150 : vector<8x16xf32>
    %152 = arith.addf %149, %151 : vector<8x16xf32>
    %153 = math.tanh %152 : vector<8x16xf32>
    %cst_36 = arith.constant 1.000000e+00 : f32
    %154 = vector.broadcast %cst_36 : f32 to vector<8x16xf32>
    %155 = arith.subf %154, %148 : vector<8x16xf32>
    %156 = arith.mulf %155, %153 : vector<8x16xf32>
    %157 = arith.mulf %148, %109 : vector<8x16xf32>
    %158 = arith.addf %156, %157 : vector<8x16xf32>
    %159 = vector.extract_strided_slice %0 {offsets = [0, 3], sizes = [8, 1], strides = [1, 1]} : vector<8x8xf32> to vector<8x1xf32>
    %160 = tpu.concatenate %134, %159, %7 in 1 : vector<8x16xf32>, vector<8x1xf32>, vector<8x7xf32> -> vector<8x24xf32>
    %cst_37 = arith.constant dense<0.000000e+00> : vector<8x64xf32>
    %161 = tpu.matmul %160, %1, %cst_37 {dimension_numbers = #tpu.dot_dimension_numbers<[1], [0], [0], [1], [0, 0, 1, 1], [], []>} : vector<8x24xf32>, vector<24x64xf32>, vector<8x64xf32> -> vector<8x64xf32>
    %162 = vector.extract_strided_slice %161 {offsets = [0, 0], sizes = [8, 16], strides = [1, 1]} : vector<8x64xf32> to vector<8x16xf32>
    %163 = arith.negf %162 : vector<8x16xf32>
    %164 = math.exp %163 : vector<8x16xf32>
    %cst_38 = arith.constant 1.000000e+00 : f32
    %165 = vector.broadcast %cst_38 : f32 to vector<8x16xf32>
    %166 = arith.addf %165, %164 : vector<8x16xf32>
    %167 = arith.divf %165, %166 : vector<8x16xf32>
    %168 = vector.extract_strided_slice %161 {offsets = [0, 16], sizes = [8, 16], strides = [1, 1]} : vector<8x64xf32> to vector<8x16xf32>
    %169 = arith.negf %168 : vector<8x16xf32>
    %170 = math.exp %169 : vector<8x16xf32>
    %cst_39 = arith.constant 1.000000e+00 : f32
    %171 = vector.broadcast %cst_39 : f32 to vector<8x16xf32>
    %172 = arith.addf %171, %170 : vector<8x16xf32>
    %173 = arith.divf %171, %172 : vector<8x16xf32>
    %174 = vector.extract_strided_slice %161 {offsets = [0, 32], sizes = [8, 16], strides = [1, 1]} : vector<8x64xf32> to vector<8x16xf32>
    %175 = vector.extract_strided_slice %161 {offsets = [0, 48], sizes = [8, 16], strides = [1, 1]} : vector<8x64xf32> to vector<8x16xf32>
    %176 = arith.mulf %167, %175 : vector<8x16xf32>
    %177 = arith.addf %174, %176 : vector<8x16xf32>
    %178 = math.tanh %177 : vector<8x16xf32>
    %cst_40 = arith.constant 1.000000e+00 : f32
    %179 = vector.broadcast %cst_40 : f32 to vector<8x16xf32>
    %180 = arith.subf %179, %173 : vector<8x16xf32>
    %181 = arith.mulf %180, %178 : vector<8x16xf32>
    %182 = arith.mulf %173, %134 : vector<8x16xf32>
    %183 = arith.addf %181, %182 : vector<8x16xf32>
    %184 = tpu.concatenate %183, %158, %9 in 1 : vector<8x16xf32>, vector<8x16xf32>, vector<8x8xf32> -> vector<8x40xf32>
    %cst_41 = arith.constant dense<0.000000e+00> : vector<8x64xf32>
    %185 = tpu.matmul %184, %2, %cst_41 {dimension_numbers = #tpu.dot_dimension_numbers<[1], [0], [0], [1], [0, 0, 1, 1], [], []>} : vector<8x40xf32>, vector<40x64xf32>, vector<8x64xf32> -> vector<8x64xf32>
    %186 = vector.extract_strided_slice %185 {offsets = [0, 0], sizes = [8, 16], strides = [1, 1]} : vector<8x64xf32> to vector<8x16xf32>
    %187 = arith.negf %186 : vector<8x16xf32>
    %188 = math.exp %187 : vector<8x16xf32>
    %cst_42 = arith.constant 1.000000e+00 : f32
    %189 = vector.broadcast %cst_42 : f32 to vector<8x16xf32>
    %190 = arith.addf %189, %188 : vector<8x16xf32>
    %191 = arith.divf %189, %190 : vector<8x16xf32>
    %192 = vector.extract_strided_slice %185 {offsets = [0, 16], sizes = [8, 16], strides = [1, 1]} : vector<8x64xf32> to vector<8x16xf32>
    %193 = arith.negf %192 : vector<8x16xf32>
    %194 = math.exp %193 : vector<8x16xf32>
    %cst_43 = arith.constant 1.000000e+00 : f32
    %195 = vector.broadcast %cst_43 : f32 to vector<8x16xf32>
    %196 = arith.addf %195, %194 : vector<8x16xf32>
    %197 = arith.divf %195, %196 : vector<8x16xf32>
    %198 = vector.extract_strided_slice %185 {offsets = [0, 32], sizes = [8, 16], strides = [1, 1]} : vector<8x64xf32> to vector<8x16xf32>
    %199 = vector.extract_strided_slice %185 {offsets = [0, 48], sizes = [8, 16], strides = [1, 1]} : vector<8x64xf32> to vector<8x16xf32>
    %200 = arith.mulf %191, %199 : vector<8x16xf32>
    %201 = arith.addf %198, %200 : vector<8x16xf32>
    %202 = math.tanh %201 : vector<8x16xf32>
    %cst_44 = arith.constant 1.000000e+00 : f32
    %203 = vector.broadcast %cst_44 : f32 to vector<8x16xf32>
    %204 = arith.subf %203, %197 : vector<8x16xf32>
    %205 = arith.mulf %204, %202 : vector<8x16xf32>
    %206 = arith.mulf %197, %158 : vector<8x16xf32>
    %207 = arith.addf %205, %206 : vector<8x16xf32>
    %208 = vector.extract_strided_slice %0 {offsets = [0, 4], sizes = [8, 1], strides = [1, 1]} : vector<8x8xf32> to vector<8x1xf32>
    %209 = tpu.concatenate %183, %208, %7 in 1 : vector<8x16xf32>, vector<8x1xf32>, vector<8x7xf32> -> vector<8x24xf32>
    %cst_45 = arith.constant dense<0.000000e+00> : vector<8x64xf32>
    %210 = tpu.matmul %209, %1, %cst_45 {dimension_numbers = #tpu.dot_dimension_numbers<[1], [0], [0], [1], [0, 0, 1, 1], [], []>} : vector<8x24xf32>, vector<24x64xf32>, vector<8x64xf32> -> vector<8x64xf32>
    %211 = vector.extract_strided_slice %210 {offsets = [0, 0], sizes = [8, 16], strides = [1, 1]} : vector<8x64xf32> to vector<8x16xf32>
    %212 = arith.negf %211 : vector<8x16xf32>
    %213 = math.exp %212 : vector<8x16xf32>
    %cst_46 = arith.constant 1.000000e+00 : f32
    %214 = vector.broadcast %cst_46 : f32 to vector<8x16xf32>
    %215 = arith.addf %214, %213 : vector<8x16xf32>
    %216 = arith.divf %214, %215 : vector<8x16xf32>
    %217 = vector.extract_strided_slice %210 {offsets = [0, 16], sizes = [8, 16], strides = [1, 1]} : vector<8x64xf32> to vector<8x16xf32>
    %218 = arith.negf %217 : vector<8x16xf32>
    %219 = math.exp %218 : vector<8x16xf32>
    %cst_47 = arith.constant 1.000000e+00 : f32
    %220 = vector.broadcast %cst_47 : f32 to vector<8x16xf32>
    %221 = arith.addf %220, %219 : vector<8x16xf32>
    %222 = arith.divf %220, %221 : vector<8x16xf32>
    %223 = vector.extract_strided_slice %210 {offsets = [0, 32], sizes = [8, 16], strides = [1, 1]} : vector<8x64xf32> to vector<8x16xf32>
    %224 = vector.extract_strided_slice %210 {offsets = [0, 48], sizes = [8, 16], strides = [1, 1]} : vector<8x64xf32> to vector<8x16xf32>
    %225 = arith.mulf %216, %224 : vector<8x16xf32>
    %226 = arith.addf %223, %225 : vector<8x16xf32>
    %227 = math.tanh %226 : vector<8x16xf32>
    %cst_48 = arith.constant 1.000000e+00 : f32
    %228 = vector.broadcast %cst_48 : f32 to vector<8x16xf32>
    %229 = arith.subf %228, %222 : vector<8x16xf32>
    %230 = arith.mulf %229, %227 : vector<8x16xf32>
    %231 = arith.mulf %222, %183 : vector<8x16xf32>
    %232 = arith.addf %230, %231 : vector<8x16xf32>
    %233 = tpu.concatenate %232, %207, %9 in 1 : vector<8x16xf32>, vector<8x16xf32>, vector<8x8xf32> -> vector<8x40xf32>
    %cst_49 = arith.constant dense<0.000000e+00> : vector<8x64xf32>
    %234 = tpu.matmul %233, %2, %cst_49 {dimension_numbers = #tpu.dot_dimension_numbers<[1], [0], [0], [1], [0, 0, 1, 1], [], []>} : vector<8x40xf32>, vector<40x64xf32>, vector<8x64xf32> -> vector<8x64xf32>
    %235 = vector.extract_strided_slice %234 {offsets = [0, 0], sizes = [8, 16], strides = [1, 1]} : vector<8x64xf32> to vector<8x16xf32>
    %236 = arith.negf %235 : vector<8x16xf32>
    %237 = math.exp %236 : vector<8x16xf32>
    %cst_50 = arith.constant 1.000000e+00 : f32
    %238 = vector.broadcast %cst_50 : f32 to vector<8x16xf32>
    %239 = arith.addf %238, %237 : vector<8x16xf32>
    %240 = arith.divf %238, %239 : vector<8x16xf32>
    %241 = vector.extract_strided_slice %234 {offsets = [0, 16], sizes = [8, 16], strides = [1, 1]} : vector<8x64xf32> to vector<8x16xf32>
    %242 = arith.negf %241 : vector<8x16xf32>
    %243 = math.exp %242 : vector<8x16xf32>
    %cst_51 = arith.constant 1.000000e+00 : f32
    %244 = vector.broadcast %cst_51 : f32 to vector<8x16xf32>
    %245 = arith.addf %244, %243 : vector<8x16xf32>
    %246 = arith.divf %244, %245 : vector<8x16xf32>
    %247 = vector.extract_strided_slice %234 {offsets = [0, 32], sizes = [8, 16], strides = [1, 1]} : vector<8x64xf32> to vector<8x16xf32>
    %248 = vector.extract_strided_slice %234 {offsets = [0, 48], sizes = [8, 16], strides = [1, 1]} : vector<8x64xf32> to vector<8x16xf32>
    %249 = arith.mulf %240, %248 : vector<8x16xf32>
    %250 = arith.addf %247, %249 : vector<8x16xf32>
    %251 = math.tanh %250 : vector<8x16xf32>
    %cst_52 = arith.constant 1.000000e+00 : f32
    %252 = vector.broadcast %cst_52 : f32 to vector<8x16xf32>
    %253 = arith.subf %252, %246 : vector<8x16xf32>
    %254 = arith.mulf %253, %251 : vector<8x16xf32>
    %255 = arith.mulf %246, %207 : vector<8x16xf32>
    %256 = arith.addf %254, %255 : vector<8x16xf32>
    %257 = vector.extract_strided_slice %0 {offsets = [0, 5], sizes = [8, 1], strides = [1, 1]} : vector<8x8xf32> to vector<8x1xf32>
    %258 = tpu.concatenate %232, %257, %7 in 1 : vector<8x16xf32>, vector<8x1xf32>, vector<8x7xf32> -> vector<8x24xf32>
    %cst_53 = arith.constant dense<0.000000e+00> : vector<8x64xf32>
    %259 = tpu.matmul %258, %1, %cst_53 {dimension_numbers = #tpu.dot_dimension_numbers<[1], [0], [0], [1], [0, 0, 1, 1], [], []>} : vector<8x24xf32>, vector<24x64xf32>, vector<8x64xf32> -> vector<8x64xf32>
    %260 = vector.extract_strided_slice %259 {offsets = [0, 0], sizes = [8, 16], strides = [1, 1]} : vector<8x64xf32> to vector<8x16xf32>
    %261 = arith.negf %260 : vector<8x16xf32>
    %262 = math.exp %261 : vector<8x16xf32>
    %cst_54 = arith.constant 1.000000e+00 : f32
    %263 = vector.broadcast %cst_54 : f32 to vector<8x16xf32>
    %264 = arith.addf %263, %262 : vector<8x16xf32>
    %265 = arith.divf %263, %264 : vector<8x16xf32>
    %266 = vector.extract_strided_slice %259 {offsets = [0, 16], sizes = [8, 16], strides = [1, 1]} : vector<8x64xf32> to vector<8x16xf32>
    %267 = arith.negf %266 : vector<8x16xf32>
    %268 = math.exp %267 : vector<8x16xf32>
    %cst_55 = arith.constant 1.000000e+00 : f32
    %269 = vector.broadcast %cst_55 : f32 to vector<8x16xf32>
    %270 = arith.addf %269, %268 : vector<8x16xf32>
    %271 = arith.divf %269, %270 : vector<8x16xf32>
    %272 = vector.extract_strided_slice %259 {offsets = [0, 32], sizes = [8, 16], strides = [1, 1]} : vector<8x64xf32> to vector<8x16xf32>
    %273 = vector.extract_strided_slice %259 {offsets = [0, 48], sizes = [8, 16], strides = [1, 1]} : vector<8x64xf32> to vector<8x16xf32>
    %274 = arith.mulf %265, %273 : vector<8x16xf32>
    %275 = arith.addf %272, %274 : vector<8x16xf32>
    %276 = math.tanh %275 : vector<8x16xf32>
    %cst_56 = arith.constant 1.000000e+00 : f32
    %277 = vector.broadcast %cst_56 : f32 to vector<8x16xf32>
    %278 = arith.subf %277, %271 : vector<8x16xf32>
    %279 = arith.mulf %278, %276 : vector<8x16xf32>
    %280 = arith.mulf %271, %232 : vector<8x16xf32>
    %281 = arith.addf %279, %280 : vector<8x16xf32>
    %282 = tpu.concatenate %281, %256, %9 in 1 : vector<8x16xf32>, vector<8x16xf32>, vector<8x8xf32> -> vector<8x40xf32>
    %cst_57 = arith.constant dense<0.000000e+00> : vector<8x64xf32>
    %283 = tpu.matmul %282, %2, %cst_57 {dimension_numbers = #tpu.dot_dimension_numbers<[1], [0], [0], [1], [0, 0, 1, 1], [], []>} : vector<8x40xf32>, vector<40x64xf32>, vector<8x64xf32> -> vector<8x64xf32>
    %284 = vector.extract_strided_slice %283 {offsets = [0, 0], sizes = [8, 16], strides = [1, 1]} : vector<8x64xf32> to vector<8x16xf32>
    %285 = arith.negf %284 : vector<8x16xf32>
    %286 = math.exp %285 : vector<8x16xf32>
    %cst_58 = arith.constant 1.000000e+00 : f32
    %287 = vector.broadcast %cst_58 : f32 to vector<8x16xf32>
    %288 = arith.addf %287, %286 : vector<8x16xf32>
    %289 = arith.divf %287, %288 : vector<8x16xf32>
    %290 = vector.extract_strided_slice %283 {offsets = [0, 16], sizes = [8, 16], strides = [1, 1]} : vector<8x64xf32> to vector<8x16xf32>
    %291 = arith.negf %290 : vector<8x16xf32>
    %292 = math.exp %291 : vector<8x16xf32>
    %cst_59 = arith.constant 1.000000e+00 : f32
    %293 = vector.broadcast %cst_59 : f32 to vector<8x16xf32>
    %294 = arith.addf %293, %292 : vector<8x16xf32>
    %295 = arith.divf %293, %294 : vector<8x16xf32>
    %296 = vector.extract_strided_slice %283 {offsets = [0, 32], sizes = [8, 16], strides = [1, 1]} : vector<8x64xf32> to vector<8x16xf32>
    %297 = vector.extract_strided_slice %283 {offsets = [0, 48], sizes = [8, 16], strides = [1, 1]} : vector<8x64xf32> to vector<8x16xf32>
    %298 = arith.mulf %289, %297 : vector<8x16xf32>
    %299 = arith.addf %296, %298 : vector<8x16xf32>
    %300 = math.tanh %299 : vector<8x16xf32>
    %cst_60 = arith.constant 1.000000e+00 : f32
    %301 = vector.broadcast %cst_60 : f32 to vector<8x16xf32>
    %302 = arith.subf %301, %295 : vector<8x16xf32>
    %303 = arith.mulf %302, %300 : vector<8x16xf32>
    %304 = arith.mulf %295, %256 : vector<8x16xf32>
    %305 = arith.addf %303, %304 : vector<8x16xf32>
    %306 = vector.extract_strided_slice %0 {offsets = [0, 6], sizes = [8, 1], strides = [1, 1]} : vector<8x8xf32> to vector<8x1xf32>
    %307 = tpu.concatenate %281, %306, %7 in 1 : vector<8x16xf32>, vector<8x1xf32>, vector<8x7xf32> -> vector<8x24xf32>
    %cst_61 = arith.constant dense<0.000000e+00> : vector<8x64xf32>
    %308 = tpu.matmul %307, %1, %cst_61 {dimension_numbers = #tpu.dot_dimension_numbers<[1], [0], [0], [1], [0, 0, 1, 1], [], []>} : vector<8x24xf32>, vector<24x64xf32>, vector<8x64xf32> -> vector<8x64xf32>
    %309 = vector.extract_strided_slice %308 {offsets = [0, 0], sizes = [8, 16], strides = [1, 1]} : vector<8x64xf32> to vector<8x16xf32>
    %310 = arith.negf %309 : vector<8x16xf32>
    %311 = math.exp %310 : vector<8x16xf32>
    %cst_62 = arith.constant 1.000000e+00 : f32
    %312 = vector.broadcast %cst_62 : f32 to vector<8x16xf32>
    %313 = arith.addf %312, %311 : vector<8x16xf32>
    %314 = arith.divf %312, %313 : vector<8x16xf32>
    %315 = vector.extract_strided_slice %308 {offsets = [0, 16], sizes = [8, 16], strides = [1, 1]} : vector<8x64xf32> to vector<8x16xf32>
    %316 = arith.negf %315 : vector<8x16xf32>
    %317 = math.exp %316 : vector<8x16xf32>
    %cst_63 = arith.constant 1.000000e+00 : f32
    %318 = vector.broadcast %cst_63 : f32 to vector<8x16xf32>
    %319 = arith.addf %318, %317 : vector<8x16xf32>
    %320 = arith.divf %318, %319 : vector<8x16xf32>
    %321 = vector.extract_strided_slice %308 {offsets = [0, 32], sizes = [8, 16], strides = [1, 1]} : vector<8x64xf32> to vector<8x16xf32>
    %322 = vector.extract_strided_slice %308 {offsets = [0, 48], sizes = [8, 16], strides = [1, 1]} : vector<8x64xf32> to vector<8x16xf32>
    %323 = arith.mulf %314, %322 : vector<8x16xf32>
    %324 = arith.addf %321, %323 : vector<8x16xf32>
    %325 = math.tanh %324 : vector<8x16xf32>
    %cst_64 = arith.constant 1.000000e+00 : f32
    %326 = vector.broadcast %cst_64 : f32 to vector<8x16xf32>
    %327 = arith.subf %326, %320 : vector<8x16xf32>
    %328 = arith.mulf %327, %325 : vector<8x16xf32>
    %329 = arith.mulf %320, %281 : vector<8x16xf32>
    %330 = arith.addf %328, %329 : vector<8x16xf32>
    %331 = tpu.concatenate %330, %305, %9 in 1 : vector<8x16xf32>, vector<8x16xf32>, vector<8x8xf32> -> vector<8x40xf32>
    %cst_65 = arith.constant dense<0.000000e+00> : vector<8x64xf32>
    %332 = tpu.matmul %331, %2, %cst_65 {dimension_numbers = #tpu.dot_dimension_numbers<[1], [0], [0], [1], [0, 0, 1, 1], [], []>} : vector<8x40xf32>, vector<40x64xf32>, vector<8x64xf32> -> vector<8x64xf32>
    %333 = vector.extract_strided_slice %332 {offsets = [0, 0], sizes = [8, 16], strides = [1, 1]} : vector<8x64xf32> to vector<8x16xf32>
    %334 = arith.negf %333 : vector<8x16xf32>
    %335 = math.exp %334 : vector<8x16xf32>
    %cst_66 = arith.constant 1.000000e+00 : f32
    %336 = vector.broadcast %cst_66 : f32 to vector<8x16xf32>
    %337 = arith.addf %336, %335 : vector<8x16xf32>
    %338 = arith.divf %336, %337 : vector<8x16xf32>
    %339 = vector.extract_strided_slice %332 {offsets = [0, 16], sizes = [8, 16], strides = [1, 1]} : vector<8x64xf32> to vector<8x16xf32>
    %340 = arith.negf %339 : vector<8x16xf32>
    %341 = math.exp %340 : vector<8x16xf32>
    %cst_67 = arith.constant 1.000000e+00 : f32
    %342 = vector.broadcast %cst_67 : f32 to vector<8x16xf32>
    %343 = arith.addf %342, %341 : vector<8x16xf32>
    %344 = arith.divf %342, %343 : vector<8x16xf32>
    %345 = vector.extract_strided_slice %332 {offsets = [0, 32], sizes = [8, 16], strides = [1, 1]} : vector<8x64xf32> to vector<8x16xf32>
    %346 = vector.extract_strided_slice %332 {offsets = [0, 48], sizes = [8, 16], strides = [1, 1]} : vector<8x64xf32> to vector<8x16xf32>
    %347 = arith.mulf %338, %346 : vector<8x16xf32>
    %348 = arith.addf %345, %347 : vector<8x16xf32>
    %349 = math.tanh %348 : vector<8x16xf32>
    %cst_68 = arith.constant 1.000000e+00 : f32
    %350 = vector.broadcast %cst_68 : f32 to vector<8x16xf32>
    %351 = arith.subf %350, %344 : vector<8x16xf32>
    %352 = arith.mulf %351, %349 : vector<8x16xf32>
    %353 = arith.mulf %344, %305 : vector<8x16xf32>
    %354 = arith.addf %352, %353 : vector<8x16xf32>
    %355 = vector.extract_strided_slice %0 {offsets = [0, 7], sizes = [8, 1], strides = [1, 1]} : vector<8x8xf32> to vector<8x1xf32>
    %356 = tpu.concatenate %330, %355, %7 in 1 : vector<8x16xf32>, vector<8x1xf32>, vector<8x7xf32> -> vector<8x24xf32>
    %cst_69 = arith.constant dense<0.000000e+00> : vector<8x64xf32>
    %357 = tpu.matmul %356, %1, %cst_69 {dimension_numbers = #tpu.dot_dimension_numbers<[1], [0], [0], [1], [0, 0, 1, 1], [], []>} : vector<8x24xf32>, vector<24x64xf32>, vector<8x64xf32> -> vector<8x64xf32>
    %358 = vector.extract_strided_slice %357 {offsets = [0, 0], sizes = [8, 16], strides = [1, 1]} : vector<8x64xf32> to vector<8x16xf32>
    %359 = arith.negf %358 : vector<8x16xf32>
    %360 = math.exp %359 : vector<8x16xf32>
    %cst_70 = arith.constant 1.000000e+00 : f32
    %361 = vector.broadcast %cst_70 : f32 to vector<8x16xf32>
    %362 = arith.addf %361, %360 : vector<8x16xf32>
    %363 = arith.divf %361, %362 : vector<8x16xf32>
    %364 = vector.extract_strided_slice %357 {offsets = [0, 16], sizes = [8, 16], strides = [1, 1]} : vector<8x64xf32> to vector<8x16xf32>
    %365 = arith.negf %364 : vector<8x16xf32>
    %366 = math.exp %365 : vector<8x16xf32>
    %cst_71 = arith.constant 1.000000e+00 : f32
    %367 = vector.broadcast %cst_71 : f32 to vector<8x16xf32>
    %368 = arith.addf %367, %366 : vector<8x16xf32>
    %369 = arith.divf %367, %368 : vector<8x16xf32>
    %370 = vector.extract_strided_slice %357 {offsets = [0, 32], sizes = [8, 16], strides = [1, 1]} : vector<8x64xf32> to vector<8x16xf32>
    %371 = vector.extract_strided_slice %357 {offsets = [0, 48], sizes = [8, 16], strides = [1, 1]} : vector<8x64xf32> to vector<8x16xf32>
    %372 = arith.mulf %363, %371 : vector<8x16xf32>
    %373 = arith.addf %370, %372 : vector<8x16xf32>
    %374 = math.tanh %373 : vector<8x16xf32>
    %cst_72 = arith.constant 1.000000e+00 : f32
    %375 = vector.broadcast %cst_72 : f32 to vector<8x16xf32>
    %376 = arith.subf %375, %369 : vector<8x16xf32>
    %377 = arith.mulf %376, %374 : vector<8x16xf32>
    %378 = arith.mulf %369, %330 : vector<8x16xf32>
    %379 = arith.addf %377, %378 : vector<8x16xf32>
    %380 = tpu.concatenate %379, %354, %9 in 1 : vector<8x16xf32>, vector<8x16xf32>, vector<8x8xf32> -> vector<8x40xf32>
    %cst_73 = arith.constant dense<0.000000e+00> : vector<8x64xf32>
    %381 = tpu.matmul %380, %2, %cst_73 {dimension_numbers = #tpu.dot_dimension_numbers<[1], [0], [0], [1], [0, 0, 1, 1], [], []>} : vector<8x40xf32>, vector<40x64xf32>, vector<8x64xf32> -> vector<8x64xf32>
    %382 = vector.extract_strided_slice %381 {offsets = [0, 0], sizes = [8, 16], strides = [1, 1]} : vector<8x64xf32> to vector<8x16xf32>
    %383 = arith.negf %382 : vector<8x16xf32>
    %384 = math.exp %383 : vector<8x16xf32>
    %cst_74 = arith.constant 1.000000e+00 : f32
    %385 = vector.broadcast %cst_74 : f32 to vector<8x16xf32>
    %386 = arith.addf %385, %384 : vector<8x16xf32>
    %387 = arith.divf %385, %386 : vector<8x16xf32>
    %388 = vector.extract_strided_slice %381 {offsets = [0, 16], sizes = [8, 16], strides = [1, 1]} : vector<8x64xf32> to vector<8x16xf32>
    %389 = arith.negf %388 : vector<8x16xf32>
    %390 = math.exp %389 : vector<8x16xf32>
    %cst_75 = arith.constant 1.000000e+00 : f32
    %391 = vector.broadcast %cst_75 : f32 to vector<8x16xf32>
    %392 = arith.addf %391, %390 : vector<8x16xf32>
    %393 = arith.divf %391, %392 : vector<8x16xf32>
    %394 = vector.extract_strided_slice %381 {offsets = [0, 32], sizes = [8, 16], strides = [1, 1]} : vector<8x64xf32> to vector<8x16xf32>
    %395 = vector.extract_strided_slice %381 {offsets = [0, 48], sizes = [8, 16], strides = [1, 1]} : vector<8x64xf32> to vector<8x16xf32>
    %396 = arith.mulf %387, %395 : vector<8x16xf32>
    %397 = arith.addf %394, %396 : vector<8x16xf32>
    %398 = math.tanh %397 : vector<8x16xf32>
    %cst_76 = arith.constant 1.000000e+00 : f32
    %399 = vector.broadcast %cst_76 : f32 to vector<8x16xf32>
    %400 = arith.subf %399, %393 : vector<8x16xf32>
    %401 = arith.mulf %400, %398 : vector<8x16xf32>
    %402 = arith.mulf %393, %354 : vector<8x16xf32>
    %403 = arith.addf %401, %402 : vector<8x16xf32>
    %404 = math.tanh %403 : vector<8x16xf32>
    %cst_77 = arith.constant dense<0.000000e+00> : vector<8x5xf32>
    %405 = tpu.matmul %404, %3, %cst_77 {dimension_numbers = #tpu.dot_dimension_numbers<[1], [0], [0], [1], [0, 0, 1, 1], [], []>} : vector<8x16xf32>, vector<16x5xf32>, vector<8x5xf32> -> vector<8x5xf32>
    %406 = vector.broadcast %4 : vector<1x5xf32> to vector<8x5xf32>
    %407 = arith.addf %405, %406 : vector<8x5xf32>
    %c0_78 = arith.constant 0 : index
    %c0_79 = arith.constant 0 : index
    %408 = vector.load %arg6[%c0_78, %c0_79] : memref<8x5xf32, #tpu.memory_space<vmem>>, vector<8x5xf32>
    tpu.vector_store %arg6[%c0_78, %c0_79], %407 {strides = array<i32>} : memref<8x5xf32, #tpu.memory_space<vmem>>, vector<8x5xf32>,
    return
  }
  func.func @transform_0(%arg0: i32) -> (i32, i32) {
    %c0_i32 = arith.constant 0 : i32
    %c0_i32_0 = arith.constant 0 : i32
    return %arg0, %c0_i32 : i32, i32
  }
  func.func @transform_1(%arg0: i32) -> (i32, i32) {
    %c0_i32 = arith.constant 0 : i32
    %c0_i32_0 = arith.constant 0 : i32
    %c0_i32_1 = arith.constant 0 : i32
    return %c0_i32, %c0_i32_0 : i32, i32
  }
  func.func @transform_2(%arg0: i32) -> (i32, i32) {
    %c0_i32 = arith.constant 0 : i32
    %c0_i32_0 = arith.constant 0 : i32
    %c0_i32_1 = arith.constant 0 : i32
    return %c0_i32, %c0_i32_0 : i32, i32
  }
  func.func @transform_3(%arg0: i32) -> (i32, i32) {
    %c0_i32 = arith.constant 0 : i32
    %c0_i32_0 = arith.constant 0 : i32
    %c0_i32_1 = arith.constant 0 : i32
    return %c0_i32, %c0_i32_0 : i32, i32
  }
  func.func @transform_4(%arg0: i32) -> (i32, i32) {
    %c0_i32 = arith.constant 0 : i32
    %c0_i32_0 = arith.constant 0 : i32
    %c0_i32_1 = arith.constant 0 : i32
    return %c0_i32, %c0_i32_0 : i32, i32
  }
  func.func @transform_5(%arg0: i32) -> (i32, i32) {
    %c0_i32 = arith.constant 0 : i32
    %c0_i32_0 = arith.constant 0 : i32
    return %arg0, %c0_i32 : i32, i32
  }
}

</mosaic_0001>

<llo_original>
// kernel: tpu_custom_call.1
$region0: #{tpu_custom_call.1}
  #allocation0 [shape = 'u32[]', space=smem, size = 0x4, offset = 0x4, fixed_abs, tag = 'smem constant byte address 0x4 - core index']
  #allocation1 [shape = 'u32[144,128]{1,0:T(1,128)}', space=vmem, size = 0x12000, scoped, tag = 'internal scratch']
  %s0 = inlined_call_operand.hbm [shape: f32[8,8], index: 0, kind: input, shape index: {}]
  %s1 = inlined_call_operand.vmem [shape: f32[24,64], index: 1, kind: input, shape index: {}]
  %s2 = inlined_call_operand.hbm [shape: f32[40,64], index: 2, kind: input, shape index: {}]
  %s3 = inlined_call_operand.vmem [shape: f32[16,5], index: 3, kind: input, shape index: {}]
  %s4 = inlined_call_operand.vmem [shape: f32[1,5], index: 4, kind: input, shape index: {}]
  %s5 = inlined_call_operand.hbm [shape: f32[8,5], index: 5, kind: output, shape index: {}]
  %s6 = sld [smem:[#allocation0]]
  $region38: #{tpu_custom_call.1} parent=0
    _
  %s8 = ssub.s32 1, %s6
  %s9 = scalar_select 0, %s8, %s6
  $region1: #{tpu_custom_call.1} parent=0
    #allocation2 [shape = 'u8[4096]{0}', space=vmem, size = 0x1000, scoped, tag = 'input window, operand 0, single buffered']
    #allocation3 [shape = 's32[1]{0}', space=sflag, size = 0x4, scoped, tag = 'scoped memory for tpu_custom_call.1']
    #allocation4 [shape = 's32[1]{0}', space=sflag, size = 0x4, scoped, tag = 'scoped memory for tpu_custom_call.1']
    #allocation5 [shape = 'u8[20480]{0}', space=vmem, size = 0x5000, scoped, tag = 'input window, operand 2, single buffered']
    #allocation6 [shape = 's32[1]{0}', space=sflag, size = 0x4, scoped, tag = 'scoped memory for tpu_custom_call.1']
    #allocation7 [shape = 'u8[4096]{0}', space=vmem, size = 0x1000, scoped, tag = 'output window, operand 0, single buffered']
    %10 = vsyncpa [#allocation3], 0
    %11 = vsyncpa [#allocation6], 0
    %12 = vsyncpa [#allocation4], 0
    // Predicated region
    $region2: #{tpu_custom_call.1} parent=1 // pred_check
      _
    $region3: #{tpu_custom_call.1} parent=1 // pred_check_branch
      %14 = sbr.rel (0) target = $region5
    $region4: #{tpu_custom_call.1} parent=1 // pred_region
      %s16 = ssub.s32 128, 128
      %17 = vsyncadd [#allocation3], %s16
      %s19 = sshll.u32 [#allocation2], 4
      %s20 = int_to_ptr.vmem [resolvable:$true] %s19
      %22 = dma.hbm_to_vmem [thread:$0]  %s0, 128, %s20, [#allocation3]
    $region5: #{tpu_custom_call.1} parent=1 // pred_fallthru
      _
    // Predicated region
    $region6: #{tpu_custom_call.1} parent=1 // pred_check
      _
    $region7: #{tpu_custom_call.1} parent=1 // pred_check_branch
      %24 = sbr.rel (0) target = $region9
    $region8: #{tpu_custom_call.1} parent=1 // pred_region
      _
    $region9: #{tpu_custom_call.1} parent=1 // pred_fallthru
      _
    // Predicated region
    $region10: #{tpu_custom_call.1} parent=1 // pred_check
      _
    $region11: #{tpu_custom_call.1} parent=1 // pred_check_branch
      %26 = sbr.rel (0) target = $region13
    $region12: #{tpu_custom_call.1} parent=1 // pred_region
      %s28 = ssub.s32 640, 640
      %29 = vsyncadd [#allocation6], %s28
      %s30 = sshll.u32 [#allocation5], 4
      %s31 = int_to_ptr.vmem [resolvable:$true] %s30
      %36 = dma.hbm_to_vmem [thread:$0]  %s2, 640, %s31, [#allocation6], 128, 128, 8
    $region13: #{tpu_custom_call.1} parent=1 // pred_fallthru
      _
    // Predicated region
    $region14: #{tpu_custom_call.1} parent=1 // pred_check
      _
    $region15: #{tpu_custom_call.1} parent=1 // pred_check_branch
      %38 = sbr.rel (0) target = $region17
    $region16: #{tpu_custom_call.1} parent=1 // pred_region
      _
    $region17: #{tpu_custom_call.1} parent=1 // pred_fallthru
      _
    // Predicated region
    $region18: #{tpu_custom_call.1} parent=1 // pred_check
      _
    $region19: #{tpu_custom_call.1} parent=1 // pred_check_branch
      %40 = sbr.rel (0) target = $region21
    $region20: #{tpu_custom_call.1} parent=1 // pred_region
      _
    $region21: #{tpu_custom_call.1} parent=1 // pred_fallthru
      _
    // Predicated region
    $region22: #{tpu_custom_call.1} parent=1 // pred_check
      _
    $region23: #{tpu_custom_call.1} parent=1 // pred_check_branch
      %42 = sbr.rel (0) target = $region25
    $region24: #{tpu_custom_call.1} parent=1 // pred_region
      %43 = dma.done [#allocation3], 128
    $region25: #{tpu_custom_call.1} parent=1 // pred_fallthru
      _
    // Predicated region
    $region26: #{tpu_custom_call.1} parent=1 // pred_check
      _
    $region27: #{tpu_custom_call.1} parent=1 // pred_check_branch
      %45 = sbr.rel (0) target = $region29
    $region28: #{tpu_custom_call.1} parent=1 // pred_region
      %46 = dma.done [#allocation6], 640
    $region29: #{tpu_custom_call.1} parent=1 // pred_fallthru
      _
    %v47 = vld [vmem:[#allocation2] sm:$0xff]
    %v48 = vld [vmem:[%s1] sm:$0xff]
    %v49 = vld [vmem:[%s1 + $0x8] sm:$0xff]
    %v50 = vld [vmem:[%s1 + $0x10] sm:$0xff]
    %v51 = vld [vmem:[#allocation5] sm:$0xff]
    %v52 = vld [vmem:[#allocation5 + $0x8] sm:$0xff]
    %v53 = vld [vmem:[#allocation5 + $0x10] sm:$0xff]
    %v54 = vld [vmem:[#allocation5 + $0x18] sm:$0xff]
    %v55 = vld [vmem:[#allocation5 + $0x20] sm:$0xff]
    %v56 = vld [vmem:[%s3] sm:$0xff]
    %v57 = vld [vmem:[%s3 + $0x8] sm:$0xff]
    %v58 = vld [vmem:[%s4] sm:$0x1]
    %vm59 = vcmask 7168
    %v60 = vsel %vm59, 1.0, 0.0
    %62 = vrot.lane.b32.xlu0 %v47, 16
    %v63 = vpop.permute.xlu0 %62
    %66 = vrot.lane.b32.xlu0 %v60, 17
    %v67 = vpop.permute.xlu0 %66
    %vm69 = vcmask 130048
    %v70 = vsel %vm69, 0.0, %v63
    %vm71 = vcmask 138240
    %v72 = vsel %vm71, %v70, %v67
    %vm73 = vcmask 195584
    %v75 = vsel %vm73, %v72, 0
    %77 = vmatprep.subr.mxu0 0.0
    %78 = vmatpush1.msra.mxu0 %v48
    %79 = vmatprep.subr.mxu0 0.0
    %80 = vmatpush1.msra.mxu0 %v49
    %81 = vmatprep.subr.mxu0 0.0
    %82 = vmatpush1.msra.mxu0 %v50
    %83 = vmatprep.subr.mxu0 0.0
    %84 = vmatpush1.msra.mxu0 0.0
    %85 = vmatprep.subr.mxu0 0.0
    %86 = vmatpush1.msra.mxu0 0.0
    %87 = vmatprep.subr.mxu0 0.0
    %88 = vmatpush1.msra.mxu0 0.0
    %89 = vmatprep.subr.mxu0 0.0
    %90 = vmatpush1.msra.mxu0 0.0
    %91 = vmatprep.subr.mxu0 0.0
    %92 = vmatpush1.msra.mxu0 0.0
    %93 = vmatprep.subr.mxu0 0.0
    %94 = vmatpush1.msra.mxu0 0.0
    %95 = vmatprep.subr.mxu0 0.0
    %96 = vmatpush1.msra.mxu0 0.0
    %97 = vmatprep.subr.mxu0 0.0
    %98 = vmatpush1.msra.mxu0 0.0
    %99 = vmatprep.subr.mxu0 0.0
    %100 = vmatpush1.msra.mxu0 0.0
    %101 = vmatprep.subr.mxu0 0.0
    %102 = vmatpush1.msra.mxu0 0.0
    %103 = vmatprep.subr.mxu0 0.0
    %104 = vmatpush1.msra.mxu0 0.0
    %105 = vmatprep.subr.mxu0 0.0
    %106 = vmatpush1.msra.mxu0 0.0
    %107 = vmatprep.subr.mxu0 0.0
    %108 = vmatpush1.msra.mxu0 0.0
    %109 = vmatprep.subr.mxu0 0.0
    %110 = vmatpush1.msra.mxu0 0.0
    %111 = vmatprep.subr.mxu0 0.0
    %112 = vmatpush1.msra.mxu0 0.0
    %113 = vmatprep.subr.mxu0 0.0
    %114 = vmatpush1.msra.mxu0 0.0
    %115 = vmatprep.subr.mxu0 0.0
    %116 = vmatpush1.msra.mxu0 0.0
    %117 = vmatprep.subr.mxu0 0.0
    %118 = vmatpush1.msra.mxu0 0.0
    %119 = vmatprep.subr.mxu0 0.0
    %120 = vmatpush1.msra.mxu0 0.0
    %121 = vmatprep.subr.mxu0 0.0
    %122 = vmatpush1.msra.mxu0 0.0
    %123 = vmatprep.subr.mxu0 0.0
    %124 = vmatpush1.msra.mxu0 0.0
    %125 = vmatprep.subr.mxu0 0.0
    %126 = vmatpush1.msra.mxu0 0.0
    %127 = vmatprep.subr.mxu0 0.0
    %128 = vmatpush1.msra.mxu0 0.0
    %129 = vmatprep.subr.mxu0 0.0
    %130 = vmatpush1.msra.mxu0 0.0
    %131 = vmatprep.subr.mxu0 0.0
    %132 = vmatpush1.msra.mxu0 0.0
    %133 = vmatprep.subr.mxu0 0.0
    %134 = vmatpush1.msra.mxu0 0.0
    %135 = vmatprep.subr.mxu0 0.0
    %136 = vmatpush1.msra.mxu0 0.0
    %137 = vmatprep.subr.mxu0 0.0
    %138 = vmatpush1.msra.mxu0 0.0
    %139 = vmatprep.subr.mxu0 0.0
    %140 = vmatpush1.msra.mxu0 0.0
    %141 = vmatprep.mubr.f32.mxu0 0.0
    %142 = vmatmul.mubr.f32.gmra.mrb[0].mxu0 %v75
    %v143 = vpop.f32.mrb[0].mxu0
    %v144 = vadd.f32 0.0, %v143
    %v145 = vpop.f32.mrb[0].mxu0
    %146 = vdwg.mxu0
    %v147 = vxor.u32 %v144, 2147483648
    %v148 = vmul.f32 %v147, 1.442695
    %v149 = vpow.pop %v148
    %v150 = vadd.f32 %v149, 1.0
    %v151 = vrcp.pop %v150
    %v152 = vmul.f32 1.0, %v151
    %154 = vrot.lane.b32.xlu0 %v144, 80
    %v155 = vpop.permute.xlu0 %154
    %v157 = vmul.f32 %v152, %v155
    %159 = vrot.lane.b32.xlu0 %v157, 32
    %v160 = vpop.permute.xlu0 %159
    %v162 = vadd.f32 %v144, %v160
    %v163 = vtanh.pop %v162
    %v164 = vsub.f32 1.0, %v152
    %166 = vrot.lane.b32.xlu0 %v163, 112
    %v167 = vpop.permute.xlu0 %166
    %v169 = vmul.f32 %v164, %v167
    %v170 = vmul.f32 %v152, 0.0
    %v171 = vadd.f32 %v169, %v170
    %173 = vrot.lane.b32.xlu0 %v171, 112
    %v174 = vpop.permute.xlu0 %173
    %176 = vrot.lane.b32.xlu0 %v60, 32
    %v177 = vpop.permute.xlu0 %176
    %v179 = vsel %vm69, %v174, 0.0
    %vm180 = vcmask 261120
    %v181 = vsel %vm180, %v179, %v177
    %vm182 = vcmask 326656
    %v184 = vsel %vm182, %v181, 0
    %186 = vmatprep.subr.mxu0 0.0
    %187 = vmatpush1.msra.mxu0 %v51
    %188 = vmatprep.subr.mxu0 0.0
    %189 = vmatpush1.msra.mxu0 %v52
    %190 = vmatprep.subr.mxu0 0.0
    %191 = vmatpush1.msra.mxu0 %v53
    %192 = vmatprep.subr.mxu0 0.0
    %193 = vmatpush1.msra.mxu0 %v54
    %194 = vmatprep.subr.mxu0 0.0
    %195 = vmatpush1.msra.mxu0 %v55
    %196 = vmatprep.subr.mxu0 0.0
    %197 = vmatpush1.msra.mxu0 0.0
    %198 = vmatprep.subr.mxu0 0.0
    %199 = vmatpush1.msra.mxu0 0.0
    %200 = vmatprep.subr.mxu0 0.0
    %201 = vmatpush1.msra.mxu0 0.0
    %202 = vmatprep.subr.mxu0 0.0
    %203 = vmatpush1.msra.mxu0 0.0
    %204 = vmatprep.subr.mxu0 0.0
    %205 = vmatpush1.msra.mxu0 0.0
    %206 = vmatprep.subr.mxu0 0.0
    %207 = vmatpush1.msra.mxu0 0.0
    %208 = vmatprep.subr.mxu0 0.0
    %209 = vmatpush1.msra.mxu0 0.0
    %210 = vmatprep.subr.mxu0 0.0
    %211 = vmatpush1.msra.mxu0 0.0
    %212 = vmatprep.subr.mxu0 0.0
    %213 = vmatpush1.msra.mxu0 0.0
    %214 = vmatprep.subr.mxu0 0.0
    %215 = vmatpush1.msra.mxu0 0.0
    %216 = vmatprep.subr.mxu0 0.0
    %217 = vmatpush1.msra.mxu0 0.0
    %218 = vmatprep.subr.mxu0 0.0
    %219 = vmatpush1.msra.mxu0 0.0
    %220 = vmatprep.subr.mxu0 0.0
    %221 = vmatpush1.msra.mxu0 0.0
    %222 = vmatprep.subr.mxu0 0.0
    %223 = vmatpush1.msra.mxu0 0.0
    %224 = vmatprep.subr.mxu0 0.0
    %225 = vmatpush1.msra.mxu0 0.0
    %226 = vmatprep.subr.mxu0 0.0
    %227 = vmatpush1.msra.mxu0 0.0
    %228 = vmatprep.subr.mxu0 0.0
    %229 = vmatpush1.msra.mxu0 0.0
    %230 = vmatprep.subr.mxu0 0.0
    %231 = vmatpush1.msra.mxu0 0.0
    %232 = vmatprep.subr.mxu0 0.0
    %233 = vmatpush1.msra.mxu0 0.0
    %234 = vmatprep.subr.mxu0 0.0
    %235 = vmatpush1.msra.mxu0 0.0
    %236 = vmatprep.subr.mxu0 0.0
    %237 = vmatpush1.msra.mxu0 0.0
    %238 = vmatprep.subr.mxu0 0.0
    %239 = vmatpush1.msra.mxu0 0.0
    %240 = vmatprep.subr.mxu0 0.0
    %241 = vmatpush1.msra.mxu0 0.0
    %242 = vmatprep.subr.mxu0 0.0
    %243 = vmatpush1.msra.mxu0 0.0
    %244 = vmatprep.subr.mxu0 0.0
    %245 = vmatpush1.msra.mxu0 0.0
    %246 = vmatprep.subr.mxu0 0.0
    %247 = vmatpush1.msra.mxu0 0.0
    %248 = vmatprep.subr.mxu0 0.0
    %249 = vmatpush1.msra.mxu0 0.0
    %250 = vmatprep.mubr.f32.mxu0 0.0
    %251 = vmatmul.mubr.f32.gmra.mrb[0].mxu0 %v184
    %v252 = vpop.f32.mrb[0].mxu0
    %v253 = vadd.f32 0.0, %v252
    %v254 = vpop.f32.mrb[0].mxu0
    %255 = vdwg.mxu0
    %v256 = vxor.u32 %v253, 2147483648
    %v257 = vmul.f32 %v256, 1.442695
    %v258 = vpow.pop %v257
    %v259 = vadd.f32 %v258, 1.0
    %v260 = vrcp.pop %v259
    %v261 = vmul.f32 1.0, %v260
    %263 = vrot.lane.b32.xlu0 %v253, 80
    %v264 = vpop.permute.xlu0 %263
    %v266 = vmul.f32 %v261, %v264
    %268 = vrot.lane.b32.xlu0 %v266, 32
    %v269 = vpop.permute.xlu0 %268
    %v271 = vadd.f32 %v253, %v269
    %v272 = vtanh.pop %v271
    %v273 = vsub.f32 1.0, %v261
    %275 = vrot.lane.b32.xlu0 %v272, 112
    %v276 = vpop.permute.xlu0 %275
    %v278 = vmul.f32 %v273, %v276
    %v279 = vmul.f32 %v261, 0.0
    %v280 = vadd.f32 %v278, %v279
    %281 = vrot.lane.b32.xlu0 %v47, 15
    %v282 = vpop.permute.xlu0 %281
    %v284 = vsel %vm69, %v174, %v282
    %v285 = vsel %vm71, %v284, %v67
    %v287 = vsel %vm73, %v285, 0
    %289 = vmatprep.subr.mxu0 0.0
    %290 = vmatpush1.msra.mxu0 %v48
    %291 = vmatprep.subr.mxu0 0.0
    %292 = vmatpush1.msra.mxu0 %v49
    %293 = vmatprep.subr.mxu0 0.0
    %294 = vmatpush1.msra.mxu0 %v50
    %295 = vmatprep.subr.mxu0 0.0
    %296 = vmatpush1.msra.mxu0 0.0
    %297 = vmatprep.subr.mxu0 0.0
    %298 = vmatpush1.msra.mxu0 0.0
    %299 = vmatprep.subr.mxu0 0.0
    %300 = vmatpush1.msra.mxu0 0.0
    %301 = vmatprep.subr.mxu0 0.0
    %302 = vmatpush1.msra.mxu0 0.0
    %303 = vmatprep.subr.mxu0 0.0
    %304 = vmatpush1.msra.mxu0 0.0
    %305 = vmatprep.subr.mxu0 0.0
    %306 = vmatpush1.msra.mxu0 0.0
    %307 = vmatprep.subr.mxu0 0.0
    %308 = vmatpush1.msra.mxu0 0.0
    %309 = vmatprep.subr.mxu0 0.0
    %310 = vmatpush1.msra.mxu0 0.0
    %311 = vmatprep.subr.mxu0 0.0
    %312 = vmatpush1.msra.mxu0 0.0
    %313 = vmatprep.subr.mxu0 0.0
    %314 = vmatpush1.msra.mxu0 0.0
    %315 = vmatprep.subr.mxu0 0.0
    %316 = vmatpush1.msra.mxu0 0.0
    %317 = vmatprep.subr.mxu0 0.0
    %318 = vmatpush1.msra.mxu0 0.0
    %319 = vmatprep.subr.mxu0 0.0
    %320 = vmatpush1.msra.mxu0 0.0
    %321 = vmatprep.subr.mxu0 0.0
    %322 = vmatpush1.msra.mxu0 0.0
    %323 = vmatprep.subr.mxu0 0.0
    %324 = vmatpush1.msra.mxu0 0.0
    %325 = vmatprep.subr.mxu0 0.0
    %326 = vmatpush1.msra.mxu0 0.0
    %327 = vmatprep.subr.mxu0 0.0
    %328 = vmatpush1.msra.mxu0 0.0
    %329 = vmatprep.subr.mxu0 0.0
    %330 = vmatpush1.msra.mxu0 0.0
    %331 = vmatprep.subr.mxu0 0.0
    %332 = vmatpush1.msra.mxu0 0.0
    %333 = vmatprep.subr.mxu0 0.0
    %334 = vmatpush1.msra.mxu0 0.0
    %335 = vmatprep.subr.mxu0 0.0
    %336 = vmatpush1.msra.mxu0 0.0
    %337 = vmatprep.subr.mxu0 0.0
    %338 = vmatpush1.msra.mxu0 0.0
    %339 = vmatprep.subr.mxu0 0.0
    %340 = vmatpush1.msra.mxu0 0.0
    %341 = vmatprep.subr.mxu0 0.0
    %342 = vmatpush1.msra.mxu0 0.0
    %343 = vmatprep.subr.mxu0 0.0
    %344 = vmatpush1.msra.mxu0 0.0
    %345 = vmatprep.subr.mxu0 0.0
    %346 = vmatpush1.msra.mxu0 0.0
    %347 = vmatprep.subr.mxu0 0.0
    %348 = vmatpush1.msra.mxu0 0.0
    %349 = vmatprep.subr.mxu0 0.0
    %350 = vmatpush1.msra.mxu0 0.0
    %351 = vmatprep.subr.mxu0 0.0
    %352 = vmatpush1.msra.mxu0 0.0
    %353 = vmatprep.mubr.f32.mxu0 0.0
    %354 = vmatmul.mubr.f32.gmra.mrb[0].mxu0 %v287
    %v355 = vpop.f32.mrb[0].mxu0
    %v356 = vadd.f32 0.0, %v355
    %v357 = vpop.f32.mrb[0].mxu0
    %358 = vdwg.mxu0
    %v359 = vxor.u32 %v356, 2147483648
    %v360 = vmul.f32 %v359, 1.442695
    %v361 = vpow.pop %v360
    %v362 = vadd.f32 %v361, 1.0
    %v363 = vrcp.pop %v362
    %v364 = vmul.f32 1.0, %v363
    %366 = vrot.lane.b32.xlu0 %v356, 80
    %v367 = vpop.permute.xlu0 %366
    %v369 = vmul.f32 %v364, %v367
    %371 = vrot.lane.b32.xlu0 %v369, 32
    %v372 = vpop.permute.xlu0 %371
    %v374 = vadd.f32 %v356, %v372
    %v375 = vtanh.pop %v374
    %v376 = vsub.f32 1.0, %v364
    %378 = vrot.lane.b32.xlu0 %v375, 112
    %v379 = vpop.permute.xlu0 %378
    %v381 = vmul.f32 %v376, %v379
    %v382 = vmul.f32 %v364, %v171
    %v383 = vadd.f32 %v381, %v382
    %385 = vrot.lane.b32.xlu0 %v383, 112
    %v386 = vpop.permute.xlu0 %385
    %v388 = vsel %vm69, %v386, %v280
    %v389 = vsel %vm180, %v388, %v177
    %v391 = vsel %vm182, %v389, 0
    %393 = vmatprep.subr.mxu0 0.0
    %394 = vmatpush1.msra.mxu0 %v51
    %395 = vmatprep.subr.mxu0 0.0
    %396 = vmatpush1.msra.mxu0 %v52
    %397 = vmatprep.subr.mxu0 0.0
    %398 = vmatpush1.msra.mxu0 %v53
    %399 = vmatprep.subr.mxu0 0.0
    %400 = vmatpush1.msra.mxu0 %v54
    %401 = vmatprep.subr.mxu0 0.0
    %402 = vmatpush1.msra.mxu0 %v55
    %403 = vmatprep.subr.mxu0 0.0
    %404 = vmatpush1.msra.mxu0 0.0
    %405 = vmatprep.subr.mxu0 0.0
    %406 = vmatpush1.msra.mxu0 0.0
    %407 = vmatprep.subr.mxu0 0.0
    %408 = vmatpush1.msra.mxu0 0.0
    %409 = vmatprep.subr.mxu0 0.0
    %410 = vmatpush1.msra.mxu0 0.0
    %411 = vmatprep.subr.mxu0 0.0
    %412 = vmatpush1.msra.mxu0 0.0
    %413 = vmatprep.subr.mxu0 0.0
    %414 = vmatpush1.msra.mxu0 0.0
    %415 = vmatprep.subr.mxu0 0.0
    %416 = vmatpush1.msra.mxu0 0.0
    %417 = vmatprep.subr.mxu0 0.0
    %418 = vmatpush1.msra.mxu0 0.0
    %419 = vmatprep.subr.mxu0 0.0
    %420 = vmatpush1.msra.mxu0 0.0
    %421 = vmatprep.subr.mxu0 0.0
    %422 = vmatpush1.msra.mxu0 0.0
    %423 = vmatprep.subr.mxu0 0.0
    %424 = vmatpush1.msra.mxu0 0.0
    %425 = vmatprep.subr.mxu0 0.0
    %426 = vmatpush1.msra.mxu0 0.0
    %427 = vmatprep.subr.mxu0 0.0
    %428 = vmatpush1.msra.mxu0 0.0
    %429 = vmatprep.subr.mxu0 0.0
    %430 = vmatpush1.msra.mxu0 0.0
    %431 = vmatprep.subr.mxu0 0.0
    %432 = vmatpush1.msra.mxu0 0.0
    %433 = vmatprep.subr.mxu0 0.0
    %434 = vmatpush1.msra.mxu0 0.0
    %435 = vmatprep.subr.mxu0 0.0
    %436 = vmatpush1.msra.mxu0 0.0
    %437 = vmatprep.subr.mxu0 0.0
    %438 = vmatpush1.msra.mxu0 0.0
    %439 = vmatprep.subr.mxu0 0.0
    %440 = vmatpush1.msra.mxu0 0.0
    %441 = vmatprep.subr.mxu0 0.0
    %442 = vmatpush1.msra.mxu0 0.0
    %443 = vmatprep.subr.mxu0 0.0
    %444 = vmatpush1.msra.mxu0 0.0
    %445 = vmatprep.subr.mxu0 0.0
    %446 = vmatpush1.msra.mxu0 0.0
    %447 = vmatprep.subr.mxu0 0.0
    %448 = vmatpush1.msra.mxu0 0.0
    %449 = vmatprep.subr.mxu0 0.0
    %450 = vmatpush1.msra.mxu0 0.0
    %451 = vmatprep.subr.mxu0 0.0
    %452 = vmatpush1.msra.mxu0 0.0
    %453 = vmatprep.subr.mxu0 0.0
    %454 = vmatpush1.msra.mxu0 0.0
    %455 = vmatprep.subr.mxu0 0.0
    %456 = vmatpush1.msra.mxu0 0.0
    %457 = vmatprep.mubr.f32.mxu0 0.0
    %458 = vmatmul.mubr.f32.gmra.mrb[0].mxu0 %v391
    %v459 = vpop.f32.mrb[0].mxu0
    %v460 = vadd.f32 0.0, %v459
    %v461 = vpop.f32.mrb[0].mxu0
    %462 = vdwg.mxu0
    %v463 = vxor.u32 %v460, 2147483648
    %v464 = vmul.f32 %v463, 1.442695
    %v465 = vpow.pop %v464
    %v466 = vadd.f32 %v465, 1.0
    %v467 = vrcp.pop %v466
    %v468 = vmul.f32 1.0, %v467
    %470 = vrot.lane.b32.xlu0 %v460, 80
    %v471 = vpop.permute.xlu0 %470
    %v473 = vmul.f32 %v468, %v471
    %475 = vrot.lane.b32.xlu0 %v473, 32
    %v476 = vpop.permute.xlu0 %475
    %v478 = vadd.f32 %v460, %v476
    %v479 = vtanh.pop %v478
    %v480 = vsub.f32 1.0, %v468
    %482 = vrot.lane.b32.xlu0 %v479, 112
    %v483 = vpop.permute.xlu0 %482
    %v485 = vmul.f32 %v480, %v483
    %v486 = vmul.f32 %v468, %v280
    %v487 = vadd.f32 %v485, %v486
    %488 = vrot.lane.b32.xlu0 %v47, 14
    %v489 = vpop.permute.xlu0 %488
    %v491 = vsel %vm69, %v386, %v489
    %v492 = vsel %vm71, %v491, %v67
    %v494 = vsel %vm73, %v492, 0
    %496 = vmatprep.subr.mxu0 0.0
    %497 = vmatpush1.msra.mxu0 %v48
    %498 = vmatprep.subr.mxu0 0.0
    %499 = vmatpush1.msra.mxu0 %v49
    %500 = vmatprep.subr.mxu0 0.0
    %501 = vmatpush1.msra.mxu0 %v50
    %502 = vmatprep.subr.mxu0 0.0
    %503 = vmatpush1.msra.mxu0 0.0
    %504 = vmatprep.subr.mxu0 0.0
    %505 = vmatpush1.msra.mxu0 0.0
    %506 = vmatprep.subr.mxu0 0.0
    %507 = vmatpush1.msra.mxu0 0.0
    %508 = vmatprep.subr.mxu0 0.0
    %509 = vmatpush1.msra.mxu0 0.0
    %510 = vmatprep.subr.mxu0 0.0
    %511 = vmatpush1.msra.mxu0 0.0
    %512 = vmatprep.subr.mxu0 0.0
    %513 = vmatpush1.msra.mxu0 0.0
    %514 = vmatprep.subr.mxu0 0.0
    %515 = vmatpush1.msra.mxu0 0.0
    %516 = vmatprep.subr.mxu0 0.0
    %517 = vmatpush1.msra.mxu0 0.0
    %518 = vmatprep.subr.mxu0 0.0
    %519 = vmatpush1.msra.mxu0 0.0
    %520 = vmatprep.subr.mxu0 0.0
    %521 = vmatpush1.msra.mxu0 0.0
    %522 = vmatprep.subr.mxu0 0.0
    %523 = vmatpush1.msra.mxu0 0.0
    %524 = vmatprep.subr.mxu0 0.0
    %525 = vmatpush1.msra.mxu0 0.0
    %526 = vmatprep.subr.mxu0 0.0
    %527 = vmatpush1.msra.mxu0 0.0
    %528 = vmatprep.subr.mxu0 0.0
    %529 = vmatpush1.msra.mxu0 0.0
    %530 = vmatprep.subr.mxu0 0.0
    %531 = vmatpush1.msra.mxu0 0.0
    %532 = vmatprep.subr.mxu0 0.0
    %533 = vmatpush1.msra.mxu0 0.0
    %534 = vmatprep.subr.mxu0 0.0
    %535 = vmatpush1.msra.mxu0 0.0
    %536 = vmatprep.subr.mxu0 0.0
    %537 = vmatpush1.msra.mxu0 0.0
    %538 = vmatprep.subr.mxu0 0.0
    %539 = vmatpush1.msra.mxu0 0.0
    %540 = vmatprep.subr.mxu0 0.0
    %541 = vmatpush1.msra.mxu0 0.0
    %542 = vmatprep.subr.mxu0 0.0
    %543 = vmatpush1.msra.mxu0 0.0
    %544 = vmatprep.subr.mxu0 0.0
    %545 = vmatpush1.msra.mxu0 0.0
    %546 = vmatprep.subr.mxu0 0.0
    %547 = vmatpush1.msra.mxu0 0.0
    %548 = vmatprep.subr.mxu0 0.0
    %549 = vmatpush1.msra.mxu0 0.0
    %550 = vmatprep.subr.mxu0 0.0
    %551 = vmatpush1.msra.mxu0 0.0
    %552 = vmatprep.subr.mxu0 0.0
    %553 = vmatpush1.msra.mxu0 0.0
    %554 = vmatprep.subr.mxu0 0.0
    %555 = vmatpush1.msra.mxu0 0.0
    %556 = vmatprep.subr.mxu0 0.0
    %557 = vmatpush1.msra.mxu0 0.0
    %558 = vmatprep.subr.mxu0 0.0
    %559 = vmatpush1.msra.mxu0 0.0
    %560 = vmatprep.mubr.f32.mxu0 0.0
    %561 = vmatmul.mubr.f32.gmra.mrb[0].mxu0 %v494
    %v562 = vpop.f32.mrb[0].mxu0
    %v563 = vadd.f32 0.0, %v562
    %v564 = vpop.f32.mrb[0].mxu0
    %565 = vdwg.mxu0
    %v566 = vxor.u32 %v563, 2147483648
    %v567 = vmul.f32 %v566, 1.442695
    %v568 = vpow.pop %v567
    %v569 = vadd.f32 %v568, 1.0
    %v570 = vrcp.pop %v569
    %v571 = vmul.f32 1.0, %v570
    %573 = vrot.lane.b32.xlu0 %v563, 80
    %v574 = vpop.permute.xlu0 %573
    %v576 = vmul.f32 %v571, %v574
    %578 = vrot.lane.b32.xlu0 %v576, 32
    %v579 = vpop.permute.xlu0 %578
    %v581 = vadd.f32 %v563, %v579
    %v582 = vtanh.pop %v581
    %v583 = vsub.f32 1.0, %v571
    %585 = vrot.lane.b32.xlu0 %v582, 112
    %v586 = vpop.permute.xlu0 %585
    %v588 = vmul.f32 %v583, %v586
    %v589 = vmul.f32 %v571, %v383
    %v590 = vadd.f32 %v588, %v589
    %592 = vrot.lane.b32.xlu0 %v590, 112
    %v593 = vpop.permute.xlu0 %592
    %v595 = vsel %vm69, %v593, %v487
    %v596 = vsel %vm180, %v595, %v177
    %v598 = vsel %vm182, %v596, 0
    %600 = vmatprep.subr.mxu0 0.0
    %601 = vmatpush1.msra.mxu0 %v51
    %602 = vmatprep.subr.mxu0 0.0
    %603 = vmatpush1.msra.mxu0 %v52
    %604 = vmatprep.subr.mxu0 0.0
    %605 = vmatpush1.msra.mxu0 %v53
    %606 = vmatprep.subr.mxu0 0.0
    %607 = vmatpush1.msra.mxu0 %v54
    %608 = vmatprep.subr.mxu0 0.0
    %609 = vmatpush1.msra.mxu0 %v55
    %610 = vmatprep.subr.mxu0 0.0
    %611 = vmatpush1.msra.mxu0 0.0
    %612 = vmatprep.subr.mxu0 0.0
    %613 = vmatpush1.msra.mxu0 0.0
    %614 = vmatprep.subr.mxu0 0.0
    %615 = vmatpush1.msra.mxu0 0.0
    %616 = vmatprep.subr.mxu0 0.0
    %617 = vmatpush1.msra.mxu0 0.0
    %618 = vmatprep.subr.mxu0 0.0
    %619 = vmatpush1.msra.mxu0 0.0
    %620 = vmatprep.subr.mxu0 0.0
    %621 = vmatpush1.msra.mxu0 0.0
    %622 = vmatprep.subr.mxu0 0.0
    %623 = vmatpush1.msra.mxu0 0.0
    %624 = vmatprep.subr.mxu0 0.0
    %625 = vmatpush1.msra.mxu0 0.0
    %626 = vmatprep.subr.mxu0 0.0
    %627 = vmatpush1.msra.mxu0 0.0
    %628 = vmatprep.subr.mxu0 0.0
    %629 = vmatpush1.msra.mxu0 0.0
    %630 = vmatprep.subr.mxu0 0.0
    %631 = vmatpush1.msra.mxu0 0.0
    %632 = vmatprep.subr.mxu0 0.0
    %633 = vmatpush1.msra.mxu0 0.0
    %634 = vmatprep.subr.mxu0 0.0
    %635 = vmatpush1.msra.mxu0 0.0
    %636 = vmatprep.subr.mxu0 0.0
    %637 = vmatpush1.msra.mxu0 0.0
    %638 = vmatprep.subr.mxu0 0.0
    %639 = vmatpush1.msra.mxu0 0.0
    %640 = vmatprep.subr.mxu0 0.0
    %641 = vmatpush1.msra.mxu0 0.0
    %642 = vmatprep.subr.mxu0 0.0
    %643 = vmatpush1.msra.mxu0 0.0
    %644 = vmatprep.subr.mxu0 0.0
    %645 = vmatpush1.msra.mxu0 0.0
    %646 = vmatprep.subr.mxu0 0.0
    %647 = vmatpush1.msra.mxu0 0.0
    %648 = vmatprep.subr.mxu0 0.0
    %649 = vmatpush1.msra.mxu0 0.0
    %650 = vmatprep.subr.mxu0 0.0
    %651 = vmatpush1.msra.mxu0 0.0
    %652 = vmatprep.subr.mxu0 0.0
    %653 = vmatpush1.msra.mxu0 0.0
    %654 = vmatprep.subr.mxu0 0.0
    %655 = vmatpush1.msra.mxu0 0.0
    %656 = vmatprep.subr.mxu0 0.0
    %657 = vmatpush1.msra.mxu0 0.0
    %658 = vmatprep.subr.mxu0 0.0
    %659 = vmatpush1.msra.mxu0 0.0
    %660 = vmatprep.subr.mxu0 0.0
    %661 = vmatpush1.msra.mxu0 0.0
    %662 = vmatprep.subr.mxu0 0.0
    %663 = vmatpush1.msra.mxu0 0.0
    %664 = vmatprep.mubr.f32.mxu0 0.0
    %665 = vmatmul.mubr.f32.gmra.mrb[0].mxu0 %v598
    %v666 = vpop.f32.mrb[0].mxu0
    %v667 = vadd.f32 0.0, %v666
    %v668 = vpop.f32.mrb[0].mxu0
    %669 = vdwg.mxu0
    %v670 = vxor.u32 %v667, 2147483648
    %v671 = vmul.f32 %v670, 1.442695
    %v672 = vpow.pop %v671
    %v673 = vadd.f32 %v672, 1.0
    %v674 = vrcp.pop %v673
    %v675 = vmul.f32 1.0, %v674
    %677 = vrot.lane.b32.xlu0 %v667, 80
    %v678 = vpop.permute.xlu0 %677
    %v680 = vmul.f32 %v675, %v678
    %682 = vrot.lane.b32.xlu0 %v680, 32
    %v683 = vpop.permute.xlu0 %682
    %v685 = vadd.f32 %v667, %v683
    %v686 = vtanh.pop %v685
    %v687 = vsub.f32 1.0, %v675
    %689 = vrot.lane.b32.xlu0 %v686, 112
    %v690 = vpop.permute.xlu0 %689
    %v692 = vmul.f32 %v687, %v690
    %v693 = vmul.f32 %v675, %v487
    %v694 = vadd.f32 %v692, %v693
    %695 = vrot.lane.b32.xlu0 %v47, 13
    %v696 = vpop.permute.xlu0 %695
    %v698 = vsel %vm69, %v593, %v696
    %v699 = vsel %vm71, %v698, %v67
    %v701 = vsel %vm73, %v699, 0
    %703 = vmatprep.subr.mxu0 0.0
    %704 = vmatpush1.msra.mxu0 %v48
    %705 = vmatprep.subr.mxu0 0.0
    %706 = vmatpush1.msra.mxu0 %v49
    %707 = vmatprep.subr.mxu0 0.0
    %708 = vmatpush1.msra.mxu0 %v50
    %709 = vmatprep.subr.mxu0 0.0
    %710 = vmatpush1.msra.mxu0 0.0
    %711 = vmatprep.subr.mxu0 0.0
    %712 = vmatpush1.msra.mxu0 0.0
    %713 = vmatprep.subr.mxu0 0.0
    %714 = vmatpush1.msra.mxu0 0.0
    %715 = vmatprep.subr.mxu0 0.0
    %716 = vmatpush1.msra.mxu0 0.0
    %717 = vmatprep.subr.mxu0 0.0
    %718 = vmatpush1.msra.mxu0 0.0
    %719 = vmatprep.subr.mxu0 0.0
    %720 = vmatpush1.msra.mxu0 0.0
    %721 = vmatprep.subr.mxu0 0.0
    %722 = vmatpush1.msra.mxu0 0.0
    %723 = vmatprep.subr.mxu0 0.0
    %724 = vmatpush1.msra.mxu0 0.0
    %725 = vmatprep.subr.mxu0 0.0
    %726 = vmatpush1.msra.mxu0 0.0
    %727 = vmatprep.subr.mxu0 0.0
    %728 = vmatpush1.msra.mxu0 0.0
    %729 = vmatprep.subr.mxu0 0.0
    %730 = vmatpush1.msra.mxu0 0.0
    %731 = vmatprep.subr.mxu0 0.0
    %732 = vmatpush1.msra.mxu0 0.0
    %733 = vmatprep.subr.mxu0 0.0
    %734 = vmatpush1.msra.mxu0 0.0
    %735 = vmatprep.subr.mxu0 0.0
    %736 = vmatpush1.msra.mxu0 0.0
    %737 = vmatprep.subr.mxu0 0.0
    %738 = vmatpush1.msra.mxu0 0.0
    %739 = vmatprep.subr.mxu0 0.0
    %740 = vmatpush1.msra.mxu0 0.0
    %741 = vmatprep.subr.mxu0 0.0
    %742 = vmatpush1.msra.mxu0 0.0
    %743 = vmatprep.subr.mxu0 0.0
    %744 = vmatpush1.msra.mxu0 0.0
    %745 = vmatprep.subr.mxu0 0.0
    %746 = vmatpush1.msra.mxu0 0.0
    %747 = vmatprep.subr.mxu0 0.0
    %748 = vmatpush1.msra.mxu0 0.0
    %749 = vmatprep.subr.mxu0 0.0
    %750 = vmatpush1.msra.mxu0 0.0
    %751 = vmatprep.subr.mxu0 0.0
    %752 = vmatpush1.msra.mxu0 0.0
    %753 = vmatprep.subr.mxu0 0.0
    %754 = vmatpush1.msra.mxu0 0.0
    %755 = vmatprep.subr.mxu0 0.0
    %756 = vmatpush1.msra.mxu0 0.0
    %757 = vmatprep.subr.mxu0 0.0
    %758 = vmatpush1.msra.mxu0 0.0
    %759 = vmatprep.subr.mxu0 0.0
    %760 = vmatpush1.msra.mxu0 0.0
    %761 = vmatprep.subr.mxu0 0.0
    %762 = vmatpush1.msra.mxu0 0.0
    %763 = vmatprep.subr.mxu0 0.0
    %764 = vmatpush1.msra.mxu0 0.0
    %765 = vmatprep.subr.mxu0 0.0
    %766 = vmatpush1.msra.mxu0 0.0
    %767 = vmatprep.mubr.f32.mxu0 0.0
    %768 = vmatmul.mubr.f32.gmra.mrb[0].mxu0 %v701
    %v769 = vpop.f32.mrb[0].mxu0
    %v770 = vadd.f32 0.0, %v769
    %v771 = vpop.f32.mrb[0].mxu0
    %772 = vdwg.mxu0
    %v773 = vxor.u32 %v770, 2147483648
    %v774 = vmul.f32 %v773, 1.442695
    %v775 = vpow.pop %v774
    %v776 = vadd.f32 %v775, 1.0
    %v777 = vrcp.pop %v776
    %v778 = vmul.f32 1.0, %v777
    %780 = vrot.lane.b32.xlu0 %v770, 80
    %v781 = vpop.permute.xlu0 %780
    %v783 = vmul.f32 %v778, %v781
    %785 = vrot.lane.b32.xlu0 %v783, 32
    %v786 = vpop.permute.xlu0 %785
    %v788 = vadd.f32 %v770, %v786
    %v789 = vtanh.pop %v788
    %v790 = vsub.f32 1.0, %v778
    %792 = vrot.lane.b32.xlu0 %v789, 112
    %v793 = vpop.permute.xlu0 %792
    %v795 = vmul.f32 %v790, %v793
    %v796 = vmul.f32 %v778, %v590
    %v797 = vadd.f32 %v795, %v796
    %799 = vrot.lane.b32.xlu0 %v797, 112
    %v800 = vpop.permute.xlu0 %799
    %v802 = vsel %vm69, %v800, %v694
    %v803 = vsel %vm180, %v802, %v177
    %v805 = vsel %vm182, %v803, 0
    %807 = vmatprep.subr.mxu0 0.0
    %808 = vmatpush1.msra.mxu0 %v51
    %809 = vmatprep.subr.mxu0 0.0
    %810 = vmatpush1.msra.mxu0 %v52
    %811 = vmatprep.subr.mxu0 0.0
    %812 = vmatpush1.msra.mxu0 %v53
    %813 = vmatprep.subr.mxu0 0.0
    %814 = vmatpush1.msra.mxu0 %v54
    %815 = vmatprep.subr.mxu0 0.0
    %816 = vmatpush1.msra.mxu0 %v55
    %817 = vmatprep.subr.mxu0 0.0
    %818 = vmatpush1.msra.mxu0 0.0
    %819 = vmatprep.subr.mxu0 0.0
    %820 = vmatpush1.msra.mxu0 0.0
    %821 = vmatprep.subr.mxu0 0.0
    %822 = vmatpush1.msra.mxu0 0.0
    %823 = vmatprep.subr.mxu0 0.0
    %824 = vmatpush1.msra.mxu0 0.0
    %825 = vmatprep.subr.mxu0 0.0
    %826 = vmatpush1.msra.mxu0 0.0
    %827 = vmatprep.subr.mxu0 0.0
    %828 = vmatpush1.msra.mxu0 0.0
    %829 = vmatprep.subr.mxu0 0.0
    %830 = vmatpush1.msra.mxu0 0.0
    %831 = vmatprep.subr.mxu0 0.0
    %832 = vmatpush1.msra.mxu0 0.0
    %833 = vmatprep.subr.mxu0 0.0
    %834 = vmatpush1.msra.mxu0 0.0
    %835 = vmatprep.subr.mxu0 0.0
    %836 = vmatpush1.msra.mxu0 0.0
    %837 = vmatprep.subr.mxu0 0.0
    %838 = vmatpush1.msra.mxu0 0.0
    %839 = vmatprep.subr.mxu0 0.0
    %840 = vmatpush1.msra.mxu0 0.0
    %841 = vmatprep.subr.mxu0 0.0
    %842 = vmatpush1.msra.mxu0 0.0
    %843 = vmatprep.subr.mxu0 0.0
    %844 = vmatpush1.msra.mxu0 0.0
    %845 = vmatprep.subr.mxu0 0.0
    %846 = vmatpush1.msra.mxu0 0.0
    %847 = vmatprep.subr.mxu0 0.0
    %848 = vmatpush1.msra.mxu0 0.0
    %849 = vmatprep.subr.mxu0 0.0
    %850 = vmatpush1.msra.mxu0 0.0
    %851 = vmatprep.subr.mxu0 0.0
    %852 = vmatpush1.msra.mxu0 0.0
    %853 = vmatprep.subr.mxu0 0.0
    %854 = vmatpush1.msra.mxu0 0.0
    %855 = vmatprep.subr.mxu0 0.0
    %856 = vmatpush1.msra.mxu0 0.0
    %857 = vmatprep.subr.mxu0 0.0
    %858 = vmatpush1.msra.mxu0 0.0
    %859 = vmatprep.subr.mxu0 0.0
    %860 = vmatpush1.msra.mxu0 0.0
    %861 = vmatprep.subr.mxu0 0.0
    %862 = vmatpush1.msra.mxu0 0.0
    %863 = vmatprep.subr.mxu0 0.0
    %864 = vmatpush1.msra.mxu0 0.0
    %865 = vmatprep.subr.mxu0 0.0
    %866 = vmatpush1.msra.mxu0 0.0
    %867 = vmatprep.subr.mxu0 0.0
    %868 = vmatpush1.msra.mxu0 0.0
    %869 = vmatprep.subr.mxu0 0.0
    %870 = vmatpush1.msra.mxu0 0.0
    %871 = vmatprep.mubr.f32.mxu0 0.0
    %872 = vmatmul.mubr.f32.gmra.mrb[0].mxu0 %v805
    %v873 = vpop.f32.mrb[0].mxu0
    %v874 = vadd.f32 0.0, %v873
    %v875 = vpop.f32.mrb[0].mxu0
    %876 = vdwg.mxu0
    %v877 = vxor.u32 %v874, 2147483648
    %v878 = vmul.f32 %v877, 1.442695
    %v879 = vpow.pop %v878
    %v880 = vadd.f32 %v879, 1.0
    %v881 = vrcp.pop %v880
    %v882 = vmul.f32 1.0, %v881
    %884 = vrot.lane.b32.xlu0 %v874, 80
    %v885 = vpop.permute.xlu0 %884
    %v887 = vmul.f32 %v882, %v885
    %889 = vrot.lane.b32.xlu0 %v887, 32
    %v890 = vpop.permute.xlu0 %889
    %v892 = vadd.f32 %v874, %v890
    %v893 = vtanh.pop %v892
    %v894 = vsub.f32 1.0, %v882
    %896 = vrot.lane.b32.xlu0 %v893, 112
    %v897 = vpop.permute.xlu0 %896
    %v899 = vmul.f32 %v894, %v897
    %v900 = vmul.f32 %v882, %v694
    %v901 = vadd.f32 %v899, %v900
    %902 = vrot.lane.b32.xlu0 %v47, 12
    %v903 = vpop.permute.xlu0 %902
    %v905 = vsel %vm69, %v800, %v903
    %v906 = vsel %vm71, %v905, %v67
    %v908 = vsel %vm73, %v906, 0
    %910 = vmatprep.subr.mxu0 0.0
    %911 = vmatpush1.msra.mxu0 %v48
    %912 = vmatprep.subr.mxu0 0.0
    %913 = vmatpush1.msra.mxu0 %v49
    %914 = vmatprep.subr.mxu0 0.0
    %915 = vmatpush1.msra.mxu0 %v50
    %916 = vmatprep.subr.mxu0 0.0
    %917 = vmatpush1.msra.mxu0 0.0
    %918 = vmatprep.subr.mxu0 0.0
    %919 = vmatpush1.msra.mxu0 0.0
    %920 = vmatprep.subr.mxu0 0.0
    %921 = vmatpush1.msra.mxu0 0.0
    %922 = vmatprep.subr.mxu0 0.0
    %923 = vmatpush1.msra.mxu0 0.0
    %924 = vmatprep.subr.mxu0 0.0
    %925 = vmatpush1.msra.mxu0 0.0
    %926 = vmatprep.subr.mxu0 0.0
    %927 = vmatpush1.msra.mxu0 0.0
    %928 = vmatprep.subr.mxu0 0.0
    %929 = vmatpush1.msra.mxu0 0.0
    %930 = vmatprep.subr.mxu0 0.0
    %931 = vmatpush1.msra.mxu0 0.0
    %932 = vmatprep.subr.mxu0 0.0
    %933 = vmatpush1.msra.mxu0 0.0
    %934 = vmatprep.subr.mxu0 0.0
    %935 = vmatpush1.msra.mxu0 0.0
    %936 = vmatprep.subr.mxu0 0.0
    %937 = vmatpush1.msra.mxu0 0.0
    %938 = vmatprep.subr.mxu0 0.0
    %939 = vmatpush1.msra.mxu0 0.0
    %940 = vmatprep.subr.mxu0 0.0
    %941 = vmatpush1.msra.mxu0 0.0
    %942 = vmatprep.subr.mxu0 0.0
    %943 = vmatpush1.msra.mxu0 0.0
    %944 = vmatprep.subr.mxu0 0.0
    %945 = vmatpush1.msra.mxu0 0.0
    %946 = vmatprep.subr.mxu0 0.0
    %947 = vmatpush1.msra.mxu0 0.0
    %948 = vmatprep.subr.mxu0 0.0
    %949 = vmatpush1.msra.mxu0 0.0
    %950 = vmatprep.subr.mxu0 0.0
    %951 = vmatpush1.msra.mxu0 0.0
    %952 = vmatprep.subr.mxu0 0.0
    %953 = vmatpush1.msra.mxu0 0.0
    %954 = vmatprep.subr.mxu0 0.0
    %955 = vmatpush1.msra.mxu0 0.0
    %956 = vmatprep.subr.mxu0 0.0
    %957 = vmatpush1.msra.mxu0 0.0
    %958 = vmatprep.subr.mxu0 0.0
    %959 = vmatpush1.msra.mxu0 0.0
    %960 = vmatprep.subr.mxu0 0.0
    %961 = vmatpush1.msra.mxu0 0.0
    %962 = vmatprep.subr.mxu0 0.0
    %963 = vmatpush1.msra.mxu0 0.0
    %964 = vmatprep.subr.mxu0 0.0
    %965 = vmatpush1.msra.mxu0 0.0
    %966 = vmatprep.subr.mxu0 0.0
    %967 = vmatpush1.msra.mxu0 0.0
    %968 = vmatprep.subr.mxu0 0.0
    %969 = vmatpush1.msra.mxu0 0.0
    %970 = vmatprep.subr.mxu0 0.0
    %971 = vmatpush1.msra.mxu0 0.0
    %972 = vmatprep.subr.mxu0 0.0
    %973 = vmatpush1.msra.mxu0 0.0
    %974 = vmatprep.mubr.f32.mxu0 0.0
    %975 = vmatmul.mubr.f32.gmra.mrb[0].mxu0 %v908
    %v976 = vpop.f32.mrb[0].mxu0
    %v977 = vadd.f32 0.0, %v976
    %v978 = vpop.f32.mrb[0].mxu0
    %979 = vdwg.mxu0
    %v980 = vxor.u32 %v977, 2147483648
    %v981 = vmul.f32 %v980, 1.442695
    %v982 = vpow.pop %v981
    %v983 = vadd.f32 %v982, 1.0
    %v984 = vrcp.pop %v983
    %v985 = vmul.f32 1.0, %v984
    %987 = vrot.lane.b32.xlu0 %v977, 80
    %v988 = vpop.permute.xlu0 %987
    %v990 = vmul.f32 %v985, %v988
    %992 = vrot.lane.b32.xlu0 %v990, 32
    %v993 = vpop.permute.xlu0 %992
    %v995 = vadd.f32 %v977, %v993
    %v996 = vtanh.pop %v995
    %v997 = vsub.f32 1.0, %v985
    %999 = vrot.lane.b32.xlu0 %v996, 112
    %v1000 = vpop.permute.xlu0 %999
    %v1002 = vmul.f32 %v997, %v1000
    %v1003 = vmul.f32 %v985, %v797
    %v1004 = vadd.f32 %v1002, %v1003
    %1006 = vrot.lane.b32.xlu0 %v1004, 112
    %v1007 = vpop.permute.xlu0 %1006
    %v1009 = vsel %vm69, %v1007, %v901
    %v1010 = vsel %vm180, %v1009, %v177
    %v1012 = vsel %vm182, %v1010, 0
    %1014 = vmatprep.subr.mxu0 0.0
    %1015 = vmatpush1.msra.mxu0 %v51
    %1016 = vmatprep.subr.mxu0 0.0
    %1017 = vmatpush1.msra.mxu0 %v52
    %1018 = vmatprep.subr.mxu0 0.0
    %1019 = vmatpush1.msra.mxu0 %v53
    %1020 = vmatprep.subr.mxu0 0.0
    %1021 = vmatpush1.msra.mxu0 %v54
    %1022 = vmatprep.subr.mxu0 0.0
    %1023 = vmatpush1.msra.mxu0 %v55
    %1024 = vmatprep.subr.mxu0 0.0
    %1025 = vmatpush1.msra.mxu0 0.0
    %1026 = vmatprep.subr.mxu0 0.0
    %1027 = vmatpush1.msra.mxu0 0.0
    %1028 = vmatprep.subr.mxu0 0.0
    %1029 = vmatpush1.msra.mxu0 0.0
    %1030 = vmatprep.subr.mxu0 0.0
    %1031 = vmatpush1.msra.mxu0 0.0
    %1032 = vmatprep.subr.mxu0 0.0
    %1033 = vmatpush1.msra.mxu0 0.0
    %1034 = vmatprep.subr.mxu0 0.0
    %1035 = vmatpush1.msra.mxu0 0.0
    %1036 = vmatprep.subr.mxu0 0.0
    %1037 = vmatpush1.msra.mxu0 0.0
    %1038 = vmatprep.subr.mxu0 0.0
    %1039 = vmatpush1.msra.mxu0 0.0
    %1040 = vmatprep.subr.mxu0 0.0
    %1041 = vmatpush1.msra.mxu0 0.0
    %1042 = vmatprep.subr.mxu0 0.0
    %1043 = vmatpush1.msra.mxu0 0.0
    %1044 = vmatprep.subr.mxu0 0.0
    %1045 = vmatpush1.msra.mxu0 0.0
    %1046 = vmatprep.subr.mxu0 0.0
    %1047 = vmatpush1.msra.mxu0 0.0
    %1048 = vmatprep.subr.mxu0 0.0
    %1049 = vmatpush1.msra.mxu0 0.0
    %1050 = vmatprep.subr.mxu0 0.0
    %1051 = vmatpush1.msra.mxu0 0.0
    %1052 = vmatprep.subr.mxu0 0.0
    %1053 = vmatpush1.msra.mxu0 0.0
    %1054 = vmatprep.subr.mxu0 0.0
    %1055 = vmatpush1.msra.mxu0 0.0
    %1056 = vmatprep.subr.mxu0 0.0
    %1057 = vmatpush1.msra.mxu0 0.0
    %1058 = vmatprep.subr.mxu0 0.0
    %1059 = vmatpush1.msra.mxu0 0.0
    %1060 = vmatprep.subr.mxu0 0.0
    %1061 = vmatpush1.msra.mxu0 0.0
    %1062 = vmatprep.subr.mxu0 0.0
    %1063 = vmatpush1.msra.mxu0 0.0
    %1064 = vmatprep.subr.mxu0 0.0
    %1065 = vmatpush1.msra.mxu0 0.0
    %1066 = vmatprep.subr.mxu0 0.0
    %1067 = vmatpush1.msra.mxu0 0.0
    %1068 = vmatprep.subr.mxu0 0.0
    %1069 = vmatpush1.msra.mxu0 0.0
    %1070 = vmatprep.subr.mxu0 0.0
    %1071 = vmatpush1.msra.mxu0 0.0
    %1072 = vmatprep.subr.mxu0 0.0
    %1073 = vmatpush1.msra.mxu0 0.0
    %1074 = vmatprep.subr.mxu0 0.0
    %1075 = vmatpush1.msra.mxu0 0.0
    %1076 = vmatprep.subr.mxu0 0.0
    %1077 = vmatpush1.msra.mxu0 0.0
    %1078 = vmatprep.mubr.f32.mxu0 0.0
    %1079 = vmatmul.mubr.f32.gmra.mrb[0].mxu0 %v1012
    %v1080 = vpop.f32.mrb[0].mxu0
    %v1081 = vadd.f32 0.0, %v1080
    %v1082 = vpop.f32.mrb[0].mxu0
    %1083 = vdwg.mxu0
    %v1084 = vxor.u32 %v1081, 2147483648
    %v1085 = vmul.f32 %v1084, 1.442695
    %v1086 = vpow.pop %v1085
    %v1087 = vadd.f32 %v1086, 1.0
    %v1088 = vrcp.pop %v1087
    %v1089 = vmul.f32 1.0, %v1088
    %1091 = vrot.lane.b32.xlu0 %v1081, 80
    %v1092 = vpop.permute.xlu0 %1091
    %v1094 = vmul.f32 %v1089, %v1092
    %1096 = vrot.lane.b32.xlu0 %v1094, 32
    %v1097 = vpop.permute.xlu0 %1096
    %v1099 = vadd.f32 %v1081, %v1097
    %v1100 = vtanh.pop %v1099
    %v1101 = vsub.f32 1.0, %v1089
    %1103 = vrot.lane.b32.xlu0 %v1100, 112
    %v1104 = vpop.permute.xlu0 %1103
    %v1106 = vmul.f32 %v1101, %v1104
    %v1107 = vmul.f32 %v1089, %v901
    %v1108 = vadd.f32 %v1106, %v1107
    %1109 = vrot.lane.b32.xlu0 %v47, 11
    %v1110 = vpop.permute.xlu0 %1109
    %v1112 = vsel %vm69, %v1007, %v1110
    %v1113 = vsel %vm71, %v1112, %v67
    %v1115 = vsel %vm73, %v1113, 0
    %1117 = vmatprep.subr.mxu0 0.0
    %1118 = vmatpush1.msra.mxu0 %v48
    %1119 = vmatprep.subr.mxu0 0.0
    %1120 = vmatpush1.msra.mxu0 %v49
    %1121 = vmatprep.subr.mxu0 0.0
    %1122 = vmatpush1.msra.mxu0 %v50
    %1123 = vmatprep.subr.mxu0 0.0
    %1124 = vmatpush1.msra.mxu0 0.0
    %1125 = vmatprep.subr.mxu0 0.0
    %1126 = vmatpush1.msra.mxu0 0.0
    %1127 = vmatprep.subr.mxu0 0.0
    %1128 = vmatpush1.msra.mxu0 0.0
    %1129 = vmatprep.subr.mxu0 0.0
    %1130 = vmatpush1.msra.mxu0 0.0
    %1131 = vmatprep.subr.mxu0 0.0
    %1132 = vmatpush1.msra.mxu0 0.0
    %1133 = vmatprep.subr.mxu0 0.0
    %1134 = vmatpush1.msra.mxu0 0.0
    %1135 = vmatprep.subr.mxu0 0.0
    %1136 = vmatpush1.msra.mxu0 0.0
    %1137 = vmatprep.subr.mxu0 0.0
    %1138 = vmatpush1.msra.mxu0 0.0
    %1139 = vmatprep.subr.mxu0 0.0
    %1140 = vmatpush1.msra.mxu0 0.0
    %1141 = vmatprep.subr.mxu0 0.0
    %1142 = vmatpush1.msra.mxu0 0.0
    %1143 = vmatprep.subr.mxu0 0.0
    %1144 = vmatpush1.msra.mxu0 0.0
    %1145 = vmatprep.subr.mxu0 0.0
    %1146 = vmatpush1.msra.mxu0 0.0
    %1147 = vmatprep.subr.mxu0 0.0
    %1148 = vmatpush1.msra.mxu0 0.0
    %1149 = vmatprep.subr.mxu0 0.0
    %1150 = vmatpush1.msra.mxu0 0.0
    %1151 = vmatprep.subr.mxu0 0.0
    %1152 = vmatpush1.msra.mxu0 0.0
    %1153 = vmatprep.subr.mxu0 0.0
    %1154 = vmatpush1.msra.mxu0 0.0
    %1155 = vmatprep.subr.mxu0 0.0
    %1156 = vmatpush1.msra.mxu0 0.0
    %1157 = vmatprep.subr.mxu0 0.0
    %1158 = vmatpush1.msra.mxu0 0.0
    %1159 = vmatprep.subr.mxu0 0.0
    %1160 = vmatpush1.msra.mxu0 0.0
    %1161 = vmatprep.subr.mxu0 0.0
    %1162 = vmatpush1.msra.mxu0 0.0
    %1163 = vmatprep.subr.mxu0 0.0
    %1164 = vmatpush1.msra.mxu0 0.0
    %1165 = vmatprep.subr.mxu0 0.0
    %1166 = vmatpush1.msra.mxu0 0.0
    %1167 = vmatprep.subr.mxu0 0.0
    %1168 = vmatpush1.msra.mxu0 0.0
    %1169 = vmatprep.subr.mxu0 0.0
    %1170 = vmatpush1.msra.mxu0 0.0
    %1171 = vmatprep.subr.mxu0 0.0
    %1172 = vmatpush1.msra.mxu0 0.0
    %1173 = vmatprep.subr.mxu0 0.0
    %1174 = vmatpush1.msra.mxu0 0.0
    %1175 = vmatprep.subr.mxu0 0.0
    %1176 = vmatpush1.msra.mxu0 0.0
    %1177 = vmatprep.subr.mxu0 0.0
    %1178 = vmatpush1.msra.mxu0 0.0
    %1179 = vmatprep.subr.mxu0 0.0
    %1180 = vmatpush1.msra.mxu0 0.0
    %1181 = vmatprep.mubr.f32.mxu0 0.0
    %1182 = vmatmul.mubr.f32.gmra.mrb[0].mxu0 %v1115
    %v1183 = vpop.f32.mrb[0].mxu0
    %v1184 = vadd.f32 0.0, %v1183
    %v1185 = vpop.f32.mrb[0].mxu0
    %1186 = vdwg.mxu0
    %v1187 = vxor.u32 %v1184, 2147483648
    %v1188 = vmul.f32 %v1187, 1.442695
    %v1189 = vpow.pop %v1188
    %v1190 = vadd.f32 %v1189, 1.0
    %v1191 = vrcp.pop %v1190
    %v1192 = vmul.f32 1.0, %v1191
    %1194 = vrot.lane.b32.xlu0 %v1184, 80
    %v1195 = vpop.permute.xlu0 %1194
    %v1197 = vmul.f32 %v1192, %v1195
    %1199 = vrot.lane.b32.xlu0 %v1197, 32
    %v1200 = vpop.permute.xlu0 %1199
    %v1202 = vadd.f32 %v1184, %v1200
    %v1203 = vtanh.pop %v1202
    %v1204 = vsub.f32 1.0, %v1192
    %1206 = vrot.lane.b32.xlu0 %v1203, 112
    %v1207 = vpop.permute.xlu0 %1206
    %v1209 = vmul.f32 %v1204, %v1207
    %v1210 = vmul.f32 %v1192, %v1004
    %v1211 = vadd.f32 %v1209, %v1210
    %1213 = vrot.lane.b32.xlu0 %v1211, 112
    %v1214 = vpop.permute.xlu0 %1213
    %v1216 = vsel %vm69, %v1214, %v1108
    %v1217 = vsel %vm180, %v1216, %v177
    %v1219 = vsel %vm182, %v1217, 0
    %1221 = vmatprep.subr.mxu0 0.0
    %1222 = vmatpush1.msra.mxu0 %v51
    %1223 = vmatprep.subr.mxu0 0.0
    %1224 = vmatpush1.msra.mxu0 %v52
    %1225 = vmatprep.subr.mxu0 0.0
    %1226 = vmatpush1.msra.mxu0 %v53
    %1227 = vmatprep.subr.mxu0 0.0
    %1228 = vmatpush1.msra.mxu0 %v54
    %1229 = vmatprep.subr.mxu0 0.0
    %1230 = vmatpush1.msra.mxu0 %v55
    %1231 = vmatprep.subr.mxu0 0.0
    %1232 = vmatpush1.msra.mxu0 0.0
    %1233 = vmatprep.subr.mxu0 0.0
    %1234 = vmatpush1.msra.mxu0 0.0
    %1235 = vmatprep.subr.mxu0 0.0
    %1236 = vmatpush1.msra.mxu0 0.0
    %1237 = vmatprep.subr.mxu0 0.0
    %1238 = vmatpush1.msra.mxu0 0.0
    %1239 = vmatprep.subr.mxu0 0.0
    %1240 = vmatpush1.msra.mxu0 0.0
    %1241 = vmatprep.subr.mxu0 0.0
    %1242 = vmatpush1.msra.mxu0 0.0
    %1243 = vmatprep.subr.mxu0 0.0
    %1244 = vmatpush1.msra.mxu0 0.0
    %1245 = vmatprep.subr.mxu0 0.0
    %1246 = vmatpush1.msra.mxu0 0.0
    %1247 = vmatprep.subr.mxu0 0.0
    %1248 = vmatpush1.msra.mxu0 0.0
    %1249 = vmatprep.subr.mxu0 0.0
    %1250 = vmatpush1.msra.mxu0 0.0
    %1251 = vmatprep.subr.mxu0 0.0
    %1252 = vmatpush1.msra.mxu0 0.0
    %1253 = vmatprep.subr.mxu0 0.0
    %1254 = vmatpush1.msra.mxu0 0.0
    %1255 = vmatprep.subr.mxu0 0.0
    %1256 = vmatpush1.msra.mxu0 0.0
    %1257 = vmatprep.subr.mxu0 0.0
    %1258 = vmatpush1.msra.mxu0 0.0
    %1259 = vmatprep.subr.mxu0 0.0
    %1260 = vmatpush1.msra.mxu0 0.0
    %1261 = vmatprep.subr.mxu0 0.0
    %1262 = vmatpush1.msra.mxu0 0.0
    %1263 = vmatprep.subr.mxu0 0.0
    %1264 = vmatpush1.msra.mxu0 0.0
    %1265 = vmatprep.subr.mxu0 0.0
    %1266 = vmatpush1.msra.mxu0 0.0
    %1267 = vmatprep.subr.mxu0 0.0
    %1268 = vmatpush1.msra.mxu0 0.0
    %1269 = vmatprep.subr.mxu0 0.0
    %1270 = vmatpush1.msra.mxu0 0.0
    %1271 = vmatprep.subr.mxu0 0.0
    %1272 = vmatpush1.msra.mxu0 0.0
    %1273 = vmatprep.subr.mxu0 0.0
    %1274 = vmatpush1.msra.mxu0 0.0
    %1275 = vmatprep.subr.mxu0 0.0
    %1276 = vmatpush1.msra.mxu0 0.0
    %1277 = vmatprep.subr.mxu0 0.0
    %1278 = vmatpush1.msra.mxu0 0.0
    %1279 = vmatprep.subr.mxu0 0.0
    %1280 = vmatpush1.msra.mxu0 0.0
    %1281 = vmatprep.subr.mxu0 0.0
    %1282 = vmatpush1.msra.mxu0 0.0
    %1283 = vmatprep.subr.mxu0 0.0
    %1284 = vmatpush1.msra.mxu0 0.0
    %1285 = vmatprep.mubr.f32.mxu0 0.0
    %1286 = vmatmul.mubr.f32.gmra.mrb[0].mxu0 %v1219
    %v1287 = vpop.f32.mrb[0].mxu0
    %v1288 = vadd.f32 0.0, %v1287
    %v1289 = vpop.f32.mrb[0].mxu0
    %1290 = vdwg.mxu0
    %v1291 = vxor.u32 %v1288, 2147483648
    %v1292 = vmul.f32 %v1291, 1.442695
    %v1293 = vpow.pop %v1292
    %v1294 = vadd.f32 %v1293, 1.0
    %v1295 = vrcp.pop %v1294
    %v1296 = vmul.f32 1.0, %v1295
    %1298 = vrot.lane.b32.xlu0 %v1288, 80
    %v1299 = vpop.permute.xlu0 %1298
    %v1301 = vmul.f32 %v1296, %v1299
    %1303 = vrot.lane.b32.xlu0 %v1301, 32
    %v1304 = vpop.permute.xlu0 %1303
    %v1306 = vadd.f32 %v1288, %v1304
    %v1307 = vtanh.pop %v1306
    %v1308 = vsub.f32 1.0, %v1296
    %1310 = vrot.lane.b32.xlu0 %v1307, 112
    %v1311 = vpop.permute.xlu0 %1310
    %v1313 = vmul.f32 %v1308, %v1311
    %v1314 = vmul.f32 %v1296, %v1108
    %v1315 = vadd.f32 %v1313, %v1314
    %1316 = vrot.lane.b32.xlu0 %v47, 10
    %v1317 = vpop.permute.xlu0 %1316
    %v1319 = vsel %vm69, %v1214, %v1317
    %v1320 = vsel %vm71, %v1319, %v67
    %v1322 = vsel %vm73, %v1320, 0
    %1324 = vmatprep.subr.mxu0 0.0
    %1325 = vmatpush1.msra.mxu0 %v48
    %1326 = vmatprep.subr.mxu0 0.0
    %1327 = vmatpush1.msra.mxu0 %v49
    %1328 = vmatprep.subr.mxu0 0.0
    %1329 = vmatpush1.msra.mxu0 %v50
    %1330 = vmatprep.subr.mxu0 0.0
    %1331 = vmatpush1.msra.mxu0 0.0
    %1332 = vmatprep.subr.mxu0 0.0
    %1333 = vmatpush1.msra.mxu0 0.0
    %1334 = vmatprep.subr.mxu0 0.0
    %1335 = vmatpush1.msra.mxu0 0.0
    %1336 = vmatprep.subr.mxu0 0.0
    %1337 = vmatpush1.msra.mxu0 0.0
    %1338 = vmatprep.subr.mxu0 0.0
    %1339 = vmatpush1.msra.mxu0 0.0
    %1340 = vmatprep.subr.mxu0 0.0
    %1341 = vmatpush1.msra.mxu0 0.0
    %1342 = vmatprep.subr.mxu0 0.0
    %1343 = vmatpush1.msra.mxu0 0.0
    %1344 = vmatprep.subr.mxu0 0.0
    %1345 = vmatpush1.msra.mxu0 0.0
    %1346 = vmatprep.subr.mxu0 0.0
    %1347 = vmatpush1.msra.mxu0 0.0
    %1348 = vmatprep.subr.mxu0 0.0
    %1349 = vmatpush1.msra.mxu0 0.0
    %1350 = vmatprep.subr.mxu0 0.0
    %1351 = vmatpush1.msra.mxu0 0.0
    %1352 = vmatprep.subr.mxu0 0.0
    %1353 = vmatpush1.msra.mxu0 0.0
    %1354 = vmatprep.subr.mxu0 0.0
    %1355 = vmatpush1.msra.mxu0 0.0
    %1356 = vmatprep.subr.mxu0 0.0
    %1357 = vmatpush1.msra.mxu0 0.0
    %1358 = vmatprep.subr.mxu0 0.0
    %1359 = vmatpush1.msra.mxu0 0.0
    %1360 = vmatprep.subr.mxu0 0.0
    %1361 = vmatpush1.msra.mxu0 0.0
    %1362 = vmatprep.subr.mxu0 0.0
    %1363 = vmatpush1.msra.mxu0 0.0
    %1364 = vmatprep.subr.mxu0 0.0
    %1365 = vmatpush1.msra.mxu0 0.0
    %1366 = vmatprep.subr.mxu0 0.0
    %1367 = vmatpush1.msra.mxu0 0.0
    %1368 = vmatprep.subr.mxu0 0.0
    %1369 = vmatpush1.msra.mxu0 0.0
    %1370 = vmatprep.subr.mxu0 0.0
    %1371 = vmatpush1.msra.mxu0 0.0
    %1372 = vmatprep.subr.mxu0 0.0
    %1373 = vmatpush1.msra.mxu0 0.0
    %1374 = vmatprep.subr.mxu0 0.0
    %1375 = vmatpush1.msra.mxu0 0.0
    %1376 = vmatprep.subr.mxu0 0.0
    %1377 = vmatpush1.msra.mxu0 0.0
    %1378 = vmatprep.subr.mxu0 0.0
    %1379 = vmatpush1.msra.mxu0 0.0
    %1380 = vmatprep.subr.mxu0 0.0
    %1381 = vmatpush1.msra.mxu0 0.0
    %1382 = vmatprep.subr.mxu0 0.0
    %1383 = vmatpush1.msra.mxu0 0.0
    %1384 = vmatprep.subr.mxu0 0.0
    %1385 = vmatpush1.msra.mxu0 0.0
    %1386 = vmatprep.subr.mxu0 0.0
    %1387 = vmatpush1.msra.mxu0 0.0
    %1388 = vmatprep.mubr.f32.mxu0 0.0
    %1389 = vmatmul.mubr.f32.gmra.mrb[0].mxu0 %v1322
    %v1390 = vpop.f32.mrb[0].mxu0
    %v1391 = vadd.f32 0.0, %v1390
    %v1392 = vpop.f32.mrb[0].mxu0
    %1393 = vdwg.mxu0
    %v1394 = vxor.u32 %v1391, 2147483648
    %v1395 = vmul.f32 %v1394, 1.442695
    %v1396 = vpow.pop %v1395
    %v1397 = vadd.f32 %v1396, 1.0
    %v1398 = vrcp.pop %v1397
    %v1399 = vmul.f32 1.0, %v1398
    %1401 = vrot.lane.b32.xlu0 %v1391, 80
    %v1402 = vpop.permute.xlu0 %1401
    %v1404 = vmul.f32 %v1399, %v1402
    %1406 = vrot.lane.b32.xlu0 %v1404, 32
    %v1407 = vpop.permute.xlu0 %1406
    %v1409 = vadd.f32 %v1391, %v1407
    %v1410 = vtanh.pop %v1409
    %v1411 = vsub.f32 1.0, %v1399
    %1413 = vrot.lane.b32.xlu0 %v1410, 112
    %v1414 = vpop.permute.xlu0 %1413
    %v1416 = vmul.f32 %v1411, %v1414
    %v1417 = vmul.f32 %v1399, %v1211
    %v1418 = vadd.f32 %v1416, %v1417
    %1420 = vrot.lane.b32.xlu0 %v1418, 112
    %v1421 = vpop.permute.xlu0 %1420
    %v1423 = vsel %vm69, %v1421, %v1315
    %v1424 = vsel %vm180, %v1423, %v177
    %v1426 = vsel %vm182, %v1424, 0
    %1428 = vmatprep.subr.mxu0 0.0
    %1429 = vmatpush1.msra.mxu0 %v51
    %1430 = vmatprep.subr.mxu0 0.0
    %1431 = vmatpush1.msra.mxu0 %v52
    %1432 = vmatprep.subr.mxu0 0.0
    %1433 = vmatpush1.msra.mxu0 %v53
    %1434 = vmatprep.subr.mxu0 0.0
    %1435 = vmatpush1.msra.mxu0 %v54
    %1436 = vmatprep.subr.mxu0 0.0
    %1437 = vmatpush1.msra.mxu0 %v55
    %1438 = vmatprep.subr.mxu0 0.0
    %1439 = vmatpush1.msra.mxu0 0.0
    %1440 = vmatprep.subr.mxu0 0.0
    %1441 = vmatpush1.msra.mxu0 0.0
    %1442 = vmatprep.subr.mxu0 0.0
    %1443 = vmatpush1.msra.mxu0 0.0
    %1444 = vmatprep.subr.mxu0 0.0
    %1445 = vmatpush1.msra.mxu0 0.0
    %1446 = vmatprep.subr.mxu0 0.0
    %1447 = vmatpush1.msra.mxu0 0.0
    %1448 = vmatprep.subr.mxu0 0.0
    %1449 = vmatpush1.msra.mxu0 0.0
    %1450 = vmatprep.subr.mxu0 0.0
    %1451 = vmatpush1.msra.mxu0 0.0
    %1452 = vmatprep.subr.mxu0 0.0
    %1453 = vmatpush1.msra.mxu0 0.0
    %1454 = vmatprep.subr.mxu0 0.0
    %1455 = vmatpush1.msra.mxu0 0.0
    %1456 = vmatprep.subr.mxu0 0.0
    %1457 = vmatpush1.msra.mxu0 0.0
    %1458 = vmatprep.subr.mxu0 0.0
    %1459 = vmatpush1.msra.mxu0 0.0
    %1460 = vmatprep.subr.mxu0 0.0
    %1461 = vmatpush1.msra.mxu0 0.0
    %1462 = vmatprep.subr.mxu0 0.0
    %1463 = vmatpush1.msra.mxu0 0.0
    %1464 = vmatprep.subr.mxu0 0.0
    %1465 = vmatpush1.msra.mxu0 0.0
    %1466 = vmatprep.subr.mxu0 0.0
    %1467 = vmatpush1.msra.mxu0 0.0
    %1468 = vmatprep.subr.mxu0 0.0
    %1469 = vmatpush1.msra.mxu0 0.0
    %1470 = vmatprep.subr.mxu0 0.0
    %1471 = vmatpush1.msra.mxu0 0.0
    %1472 = vmatprep.subr.mxu0 0.0
    %1473 = vmatpush1.msra.mxu0 0.0
    %1474 = vmatprep.subr.mxu0 0.0
    %1475 = vmatpush1.msra.mxu0 0.0
    %1476 = vmatprep.subr.mxu0 0.0
    %1477 = vmatpush1.msra.mxu0 0.0
    %1478 = vmatprep.subr.mxu0 0.0
    %1479 = vmatpush1.msra.mxu0 0.0
    %1480 = vmatprep.subr.mxu0 0.0
    %1481 = vmatpush1.msra.mxu0 0.0
    %1482 = vmatprep.subr.mxu0 0.0
    %1483 = vmatpush1.msra.mxu0 0.0
    %1484 = vmatprep.subr.mxu0 0.0
    %1485 = vmatpush1.msra.mxu0 0.0
    %1486 = vmatprep.subr.mxu0 0.0
    %1487 = vmatpush1.msra.mxu0 0.0
    %1488 = vmatprep.subr.mxu0 0.0
    %1489 = vmatpush1.msra.mxu0 0.0
    %1490 = vmatprep.subr.mxu0 0.0
    %1491 = vmatpush1.msra.mxu0 0.0
    %1492 = vmatprep.mubr.f32.mxu0 0.0
    %1493 = vmatmul.mubr.f32.gmra.mrb[0].mxu0 %v1426
    %v1494 = vpop.f32.mrb[0].mxu0
    %v1495 = vadd.f32 0.0, %v1494
    %v1496 = vpop.f32.mrb[0].mxu0
    %1497 = vdwg.mxu0
    %v1498 = vxor.u32 %v1495, 2147483648
    %v1499 = vmul.f32 %v1498, 1.442695
    %v1500 = vpow.pop %v1499
    %v1501 = vadd.f32 %v1500, 1.0
    %v1502 = vrcp.pop %v1501
    %v1503 = vmul.f32 1.0, %v1502
    %1505 = vrot.lane.b32.xlu0 %v1495, 80
    %v1506 = vpop.permute.xlu0 %1505
    %v1508 = vmul.f32 %v1503, %v1506
    %1510 = vrot.lane.b32.xlu0 %v1508, 32
    %v1511 = vpop.permute.xlu0 %1510
    %v1513 = vadd.f32 %v1495, %v1511
    %v1514 = vtanh.pop %v1513
    %v1515 = vsub.f32 1.0, %v1503
    %1517 = vrot.lane.b32.xlu0 %v1514, 112
    %v1518 = vpop.permute.xlu0 %1517
    %v1520 = vmul.f32 %v1515, %v1518
    %v1521 = vmul.f32 %v1503, %v1315
    %v1522 = vadd.f32 %v1520, %v1521
    %1523 = vrot.lane.b32.xlu0 %v47, 9
    %v1524 = vpop.permute.xlu0 %1523
    %v1526 = vsel %vm69, %v1421, %v1524
    %v1527 = vsel %vm71, %v1526, %v67
    %v1529 = vsel %vm73, %v1527, 0
    %1531 = vmatprep.subr.mxu0 0.0
    %1532 = vmatpush1.msra.mxu0 %v48
    %1533 = vmatprep.subr.mxu0 0.0
    %1534 = vmatpush1.msra.mxu0 %v49
    %1535 = vmatprep.subr.mxu0 0.0
    %1536 = vmatpush1.msra.mxu0 %v50
    %1537 = vmatprep.subr.mxu0 0.0
    %1538 = vmatpush1.msra.mxu0 0.0
    %1539 = vmatprep.subr.mxu0 0.0
    %1540 = vmatpush1.msra.mxu0 0.0
    %1541 = vmatprep.subr.mxu0 0.0
    %1542 = vmatpush1.msra.mxu0 0.0
    %1543 = vmatprep.subr.mxu0 0.0
    %1544 = vmatpush1.msra.mxu0 0.0
    %1545 = vmatprep.subr.mxu0 0.0
    %1546 = vmatpush1.msra.mxu0 0.0
    %1547 = vmatprep.subr.mxu0 0.0
    %1548 = vmatpush1.msra.mxu0 0.0
    %1549 = vmatprep.subr.mxu0 0.0
    %1550 = vmatpush1.msra.mxu0 0.0
    %1551 = vmatprep.subr.mxu0 0.0
    %1552 = vmatpush1.msra.mxu0 0.0
    %1553 = vmatprep.subr.mxu0 0.0
    %1554 = vmatpush1.msra.mxu0 0.0
    %1555 = vmatprep.subr.mxu0 0.0
    %1556 = vmatpush1.msra.mxu0 0.0
    %1557 = vmatprep.subr.mxu0 0.0
    %1558 = vmatpush1.msra.mxu0 0.0
    %1559 = vmatprep.subr.mxu0 0.0
    %1560 = vmatpush1.msra.mxu0 0.0
    %1561 = vmatprep.subr.mxu0 0.0
    %1562 = vmatpush1.msra.mxu0 0.0
    %1563 = vmatprep.subr.mxu0 0.0
    %1564 = vmatpush1.msra.mxu0 0.0
    %1565 = vmatprep.subr.mxu0 0.0
    %1566 = vmatpush1.msra.mxu0 0.0
    %1567 = vmatprep.subr.mxu0 0.0
    %1568 = vmatpush1.msra.mxu0 0.0
    %1569 = vmatprep.subr.mxu0 0.0
    %1570 = vmatpush1.msra.mxu0 0.0
    %1571 = vmatprep.subr.mxu0 0.0
    %1572 = vmatpush1.msra.mxu0 0.0
    %1573 = vmatprep.subr.mxu0 0.0
    %1574 = vmatpush1.msra.mxu0 0.0
    %1575 = vmatprep.subr.mxu0 0.0
    %1576 = vmatpush1.msra.mxu0 0.0
    %1577 = vmatprep.subr.mxu0 0.0
    %1578 = vmatpush1.msra.mxu0 0.0
    %1579 = vmatprep.subr.mxu0 0.0
    %1580 = vmatpush1.msra.mxu0 0.0
    %1581 = vmatprep.subr.mxu0 0.0
    %1582 = vmatpush1.msra.mxu0 0.0
    %1583 = vmatprep.subr.mxu0 0.0
    %1584 = vmatpush1.msra.mxu0 0.0
    %1585 = vmatprep.subr.mxu0 0.0
    %1586 = vmatpush1.msra.mxu0 0.0
    %1587 = vmatprep.subr.mxu0 0.0
    %1588 = vmatpush1.msra.mxu0 0.0
    %1589 = vmatprep.subr.mxu0 0.0
    %1590 = vmatpush1.msra.mxu0 0.0
    %1591 = vmatprep.subr.mxu0 0.0
    %1592 = vmatpush1.msra.mxu0 0.0
    %1593 = vmatprep.subr.mxu0 0.0
    %1594 = vmatpush1.msra.mxu0 0.0
    %1595 = vmatprep.mubr.f32.mxu0 0.0
    %1596 = vmatmul.mubr.f32.gmra.mrb[0].mxu0 %v1529
    %v1597 = vpop.f32.mrb[0].mxu0
    %v1598 = vadd.f32 0.0, %v1597
    %v1599 = vpop.f32.mrb[0].mxu0
    %1600 = vdwg.mxu0
    %v1601 = vxor.u32 %v1598, 2147483648
    %v1602 = vmul.f32 %v1601, 1.442695
    %v1603 = vpow.pop %v1602
    %v1604 = vadd.f32 %v1603, 1.0
    %v1605 = vrcp.pop %v1604
    %v1606 = vmul.f32 1.0, %v1605
    %1608 = vrot.lane.b32.xlu0 %v1598, 80
    %v1609 = vpop.permute.xlu0 %1608
    %v1611 = vmul.f32 %v1606, %v1609
    %1613 = vrot.lane.b32.xlu0 %v1611, 32
    %v1614 = vpop.permute.xlu0 %1613
    %v1616 = vadd.f32 %v1598, %v1614
    %v1617 = vtanh.pop %v1616
    %v1618 = vsub.f32 1.0, %v1606
    %1620 = vrot.lane.b32.xlu0 %v1617, 112
    %v1621 = vpop.permute.xlu0 %1620
    %v1623 = vmul.f32 %v1618, %v1621
    %v1624 = vmul.f32 %v1606, %v1418
    %v1625 = vadd.f32 %v1623, %v1624
    %1627 = vrot.lane.b32.xlu0 %v1625, 112
    %v1628 = vpop.permute.xlu0 %1627
    %v1630 = vsel %vm69, %v1628, %v1522
    %v1631 = vsel %vm180, %v1630, %v177
    %v1633 = vsel %vm182, %v1631, 0
    %1635 = vmatprep.subr.mxu0 0.0
    %1636 = vmatpush1.msra.mxu0 %v51
    %1637 = vmatprep.subr.mxu0 0.0
    %1638 = vmatpush1.msra.mxu0 %v52
    %1639 = vmatprep.subr.mxu0 0.0
    %1640 = vmatpush1.msra.mxu0 %v53
    %1641 = vmatprep.subr.mxu0 0.0
    %1642 = vmatpush1.msra.mxu0 %v54
    %1643 = vmatprep.subr.mxu0 0.0
    %1644 = vmatpush1.msra.mxu0 %v55
    %1645 = vmatprep.subr.mxu0 0.0
    %1646 = vmatpush1.msra.mxu0 0.0
    %1647 = vmatprep.subr.mxu0 0.0
    %1648 = vmatpush1.msra.mxu0 0.0
    %1649 = vmatprep.subr.mxu0 0.0
    %1650 = vmatpush1.msra.mxu0 0.0
    %1651 = vmatprep.subr.mxu0 0.0
    %1652 = vmatpush1.msra.mxu0 0.0
    %1653 = vmatprep.subr.mxu0 0.0
    %1654 = vmatpush1.msra.mxu0 0.0
    %1655 = vmatprep.subr.mxu0 0.0
    %1656 = vmatpush1.msra.mxu0 0.0
    %1657 = vmatprep.subr.mxu0 0.0
    %1658 = vmatpush1.msra.mxu0 0.0
    %1659 = vmatprep.subr.mxu0 0.0
    %1660 = vmatpush1.msra.mxu0 0.0
    %1661 = vmatprep.subr.mxu0 0.0
    %1662 = vmatpush1.msra.mxu0 0.0
    %1663 = vmatprep.subr.mxu0 0.0
    %1664 = vmatpush1.msra.mxu0 0.0
    %1665 = vmatprep.subr.mxu0 0.0
    %1666 = vmatpush1.msra.mxu0 0.0
    %1667 = vmatprep.subr.mxu0 0.0
    %1668 = vmatpush1.msra.mxu0 0.0
    %1669 = vmatprep.subr.mxu0 0.0
    %1670 = vmatpush1.msra.mxu0 0.0
    %1671 = vmatprep.subr.mxu0 0.0
    %1672 = vmatpush1.msra.mxu0 0.0
    %1673 = vmatprep.subr.mxu0 0.0
    %1674 = vmatpush1.msra.mxu0 0.0
    %1675 = vmatprep.subr.mxu0 0.0
    %1676 = vmatpush1.msra.mxu0 0.0
    %1677 = vmatprep.subr.mxu0 0.0
    %1678 = vmatpush1.msra.mxu0 0.0
    %1679 = vmatprep.subr.mxu0 0.0
    %1680 = vmatpush1.msra.mxu0 0.0
    %1681 = vmatprep.subr.mxu0 0.0
    %1682 = vmatpush1.msra.mxu0 0.0
    %1683 = vmatprep.subr.mxu0 0.0
    %1684 = vmatpush1.msra.mxu0 0.0
    %1685 = vmatprep.subr.mxu0 0.0
    %1686 = vmatpush1.msra.mxu0 0.0
    %1687 = vmatprep.subr.mxu0 0.0
    %1688 = vmatpush1.msra.mxu0 0.0
    %1689 = vmatprep.subr.mxu0 0.0
    %1690 = vmatpush1.msra.mxu0 0.0
    %1691 = vmatprep.subr.mxu0 0.0
    %1692 = vmatpush1.msra.mxu0 0.0
    %1693 = vmatprep.subr.mxu0 0.0
    %1694 = vmatpush1.msra.mxu0 0.0
    %1695 = vmatprep.subr.mxu0 0.0
    %1696 = vmatpush1.msra.mxu0 0.0
    %1697 = vmatprep.subr.mxu0 0.0
    %1698 = vmatpush1.msra.mxu0 0.0
    %1699 = vmatprep.mubr.f32.mxu0 0.0
    %1700 = vmatmul.mubr.f32.gmra.mrb[0].mxu0 %v1633
    %v1701 = vpop.f32.mrb[0].mxu0
    %v1702 = vadd.f32 0.0, %v1701
    %v1703 = vpop.f32.mrb[0].mxu0
    %1704 = vdwg.mxu0
    %v1705 = vxor.u32 %v1702, 2147483648
    %v1706 = vmul.f32 %v1705, 1.442695
    %v1707 = vpow.pop %v1706
    %v1708 = vadd.f32 %v1707, 1.0
    %v1709 = vrcp.pop %v1708
    %v1710 = vmul.f32 1.0, %v1709
    %1712 = vrot.lane.b32.xlu0 %v1702, 80
    %v1713 = vpop.permute.xlu0 %1712
    %v1715 = vmul.f32 %v1710, %v1713
    %1717 = vrot.lane.b32.xlu0 %v1715, 32
    %v1718 = vpop.permute.xlu0 %1717
    %v1720 = vadd.f32 %v1702, %v1718
    %v1721 = vtanh.pop %v1720
    %v1722 = vsub.f32 1.0, %v1710
    %1724 = vrot.lane.b32.xlu0 %v1721, 112
    %v1725 = vpop.permute.xlu0 %1724
    %v1727 = vmul.f32 %v1722, %v1725
    %v1728 = vmul.f32 %v1710, %v1522
    %v1729 = vadd.f32 %v1727, %v1728
    %v1730 = vtanh.pop %v1729
    %v1732 = vlaneseq
    %v1733 = vshrl.u32 %v1732, 7
    %v1734 = vsub.s32 0, %v1733
    %v1735 = vrot.slane %v58, %v1734
    %1738 = vrot.lane.b32.xlu0 %v1730, 112
    %v1739 = vpop.permute.xlu0 %1738
    %v1740 = vsel %vm69, %v1739, 0
    %1742 = vmatprep.subr.mxu0 0.0
    %1743 = vmatpush1.msra.mxu0 %v56
    %1744 = vmatprep.subr.mxu0 0.0
    %1745 = vmatpush1.msra.mxu0 %v57
    %1746 = vmatprep.subr.mxu0 0.0
    %1747 = vmatpush1.msra.mxu0 0.0
    %1748 = vmatprep.subr.mxu0 0.0
    %1749 = vmatpush1.msra.mxu0 0.0
    %1750 = vmatprep.subr.mxu0 0.0
    %1751 = vmatpush1.msra.mxu0 0.0
    %1752 = vmatprep.subr.mxu0 0.0
    %1753 = vmatpush1.msra.mxu0 0.0
    %1754 = vmatprep.subr.mxu0 0.0
    %1755 = vmatpush1.msra.mxu0 0.0
    %1756 = vmatprep.subr.mxu0 0.0
    %1757 = vmatpush1.msra.mxu0 0.0
    %1758 = vmatprep.subr.mxu0 0.0
    %1759 = vmatpush1.msra.mxu0 0.0
    %1760 = vmatprep.subr.mxu0 0.0
    %1761 = vmatpush1.msra.mxu0 0.0
    %1762 = vmatprep.subr.mxu0 0.0
    %1763 = vmatpush1.msra.mxu0 0.0
    %1764 = vmatprep.subr.mxu0 0.0
    %1765 = vmatpush1.msra.mxu0 0.0
    %1766 = vmatprep.subr.mxu0 0.0
    %1767 = vmatpush1.msra.mxu0 0.0
    %1768 = vmatprep.subr.mxu0 0.0
    %1769 = vmatpush1.msra.mxu0 0.0
    %1770 = vmatprep.subr.mxu0 0.0
    %1771 = vmatpush1.msra.mxu0 0.0
    %1772 = vmatprep.subr.mxu0 0.0
    %1773 = vmatpush1.msra.mxu0 0.0
    %1774 = vmatprep.subr.mxu0 0.0
    %1775 = vmatpush1.msra.mxu0 0.0
    %1776 = vmatprep.subr.mxu0 0.0
    %1777 = vmatpush1.msra.mxu0 0.0
    %1778 = vmatprep.subr.mxu0 0.0
    %1779 = vmatpush1.msra.mxu0 0.0
    %1780 = vmatprep.subr.mxu0 0.0
    %1781 = vmatpush1.msra.mxu0 0.0
    %1782 = vmatprep.subr.mxu0 0.0
    %1783 = vmatpush1.msra.mxu0 0.0
    %1784 = vmatprep.subr.mxu0 0.0
    %1785 = vmatpush1.msra.mxu0 0.0
    %1786 = vmatprep.subr.mxu0 0.0
    %1787 = vmatpush1.msra.mxu0 0.0
    %1788 = vmatprep.subr.mxu0 0.0
    %1789 = vmatpush1.msra.mxu0 0.0
    %1790 = vmatprep.subr.mxu0 0.0
    %1791 = vmatpush1.msra.mxu0 0.0
    %1792 = vmatprep.subr.mxu0 0.0
    %1793 = vmatpush1.msra.mxu0 0.0
    %1794 = vmatprep.subr.mxu0 0.0
    %1795 = vmatpush1.msra.mxu0 0.0
    %1796 = vmatprep.subr.mxu0 0.0
    %1797 = vmatpush1.msra.mxu0 0.0
    %1798 = vmatprep.subr.mxu0 0.0
    %1799 = vmatpush1.msra.mxu0 0.0
    %1800 = vmatprep.subr.mxu0 0.0
    %1801 = vmatpush1.msra.mxu0 0.0
    %1802 = vmatprep.subr.mxu0 0.0
    %1803 = vmatpush1.msra.mxu0 0.0
    %1804 = vmatprep.subr.mxu0 0.0
    %1805 = vmatpush1.msra.mxu0 0.0
    %1806 = vmatprep.mubr.f32.mxu0 0.0
    %1807 = vmatmul.mubr.f32.gmra.mrb[0].mxu0 %v1740
    %v1808 = vpop.f32.mrb[0].mxu0
    %v1809 = vadd.f32 %v1735, %v1808
    %v1810 = vpop.f32.mrb[0].mxu0
    %1811 = vdwg.mxu0
    %vm1812 = vcmask 39936
    %1813 = vst.msk [vmem:[#allocation7] sm:$0xff] %vm1812, %v1809
    // Predicated region
    $region30: #{tpu_custom_call.1} parent=1 // pred_check
      _
    $region31: #{tpu_custom_call.1} parent=1 // pred_check_branch
      %1815 = sbr.rel (0) target = $region33
    $region32: #{tpu_custom_call.1} parent=1 // pred_region
      %s1817 = ssub.s32 128, 128
      %1818 = vsyncadd [#allocation4], %s1817
      %s1820 = sshll.u32 [#allocation7], 4
      %s1821 = int_to_ptr.vmem [resolvable:$true] %s1820
      %1823 = dma.vmem_to_hbm [thread:$0]  %s1821, 128, %s5, [#allocation4]
    $region33: #{tpu_custom_call.1} parent=1 // pred_fallthru
      _
    // Predicated region
    $region34: #{tpu_custom_call.1} parent=1 // pred_check
      _
    $region35: #{tpu_custom_call.1} parent=1 // pred_check_branch
      %1825 = sbr.rel (0) target = $region37
    $region36: #{tpu_custom_call.1} parent=1 // pred_region
      %1826 = dma.done [#allocation4], 128
    $region37: #{tpu_custom_call.1} parent=1 // pred_fallthru
      _
    %1827 = vsyncpa [#allocation3], 1
    %1828 = vsyncpa [#allocation6], 1
    %1829 = vsyncpa [#allocation4], 1

</llo_original>
